<compile_context>
chip_gen: v7x
topology: tpu7x:2x2x1
jax: 0.10.0
libtpu: 0.0.40
codegen_flags: <defaults>
</compile_context>

<pallas_src>
import functools
import math

import numpy as np
import jax
import jax.numpy as jnp
from jax.experimental import pallas as pl
from jax.experimental.pallas import tpu as pltpu

# ----------------------------- hyper-parameters ------------------------------
NODE_IN = 16        # node_in_feats
EDGE_IN = 8         # edge_in_feats
NODE_OUT = 32       # node_out_feats (d_model of graph attention)
EDGE_HIDDEN = 32    # edge_hidden_feats
NUM_MP = 2          # num_step_message_passing
HEADS = 4           # attention_heads
ATT_LAYERS = 2      # attention_layers
ATOM_T = 10         # AtomTemplate_n
BOND_T = 12         # BondTemplate_n
TEXT_DIM = 768      # encoder hidden size (hard-coded 768 in the PyTorch model)
TEXT_HEADS = 12
TEXT_FF = 1536      # synthetic encoder FFN width
MAX_LEN = 8         # max_length (text sequence length)
VOCAB = 50
ROW_PAD = 8         # sublane alignment for row-padded 2-D arrays


# ------------------------------- small helpers -------------------------------
def _round_up(n, m=ROW_PAD):
    return ((n + m - 1) // m) * m


def _ln(v, g, b, eps):
    mu = jnp.mean(v, axis=-1, keepdims=True)
    vc = v - mu
    var = jnp.mean(vc * vc, axis=-1, keepdims=True)
    return vc * jax.lax.rsqrt(var + eps) * g + b


class KeyGen:
    def __init__(self, seed=0):
        self.key = jax.random.PRNGKey(seed)
        self.i = 0

    def __call__(self):
        self.i += 1
        return jax.random.fold_in(self.key, self.i)


# =============================== Pallas kernels ===============================
def _gnn_kernel(nf_ref, ef_ref, projw_ref, projb_ref,
                ew1_ref, eb1_ref, ew2_ref, eb2_ref,
                rexp_ref, rsum_ref, esrc_ref, sdst_ref,
                nnb_ref, wih_ref, bih_ref, whh_ref, bhh_ref,
                o_ref, *, d, num_steps):
    """Fused MPNNGNN: node projection + edge-network MLP + NUM_MP (NNConv+GRU)."""
    # edge network -> per-edge weight matrices, flattened (Ep, d*d)
    eh = jnp.maximum(jnp.dot(ef_ref[...].astype(jnp.bfloat16), ew1_ref[...],
                             preferred_element_type=jnp.float32) + eb1_ref[...], 0.0)
    w_flat = jnp.dot(eh.astype(jnp.bfloat16), ew2_ref[...],
                     preferred_element_type=jnp.float32) + eb2_ref[...]
    # initial node projection (Linear + ReLU)
    h = jnp.maximum(jnp.dot(nf_ref[...].astype(jnp.bfloat16), projw_ref[...],
                            preferred_element_type=jnp.float32) + projb_ref[...], 0.0)
    esrc = esrc_ref[...]
    sdst = sdst_ref[...]
    rexp = rexp_ref[...]
    rsum = rsum_ref[...]
    for _ in range(num_steps):
        hb = h.astype(jnp.bfloat16)
        # gather source-node features with a one-hot matmul
        src_h = jnp.dot(esrc, hb, preferred_element_type=jnp.float32)        # (Ep, d)
        # NNConv message  m[e,k] = sum_d src_h[e,d] * W[e,d,k]
        #   = ((src_h @ R_expand) * W_flat) @ R_sum   (MXU + VPU, no reshapes)
        src_x = jnp.dot(src_h.astype(jnp.bfloat16), rexp,
                        preferred_element_type=jnp.float32)                  # (Ep, d*d)
        msgs = jnp.dot((src_x * w_flat).astype(jnp.bfloat16), rsum,
                       preferred_element_type=jnp.float32)                   # (Ep, d)
        # scatter-sum to destination nodes with a one-hot matmul
        agg = jnp.dot(sdst, msgs.astype(jnp.bfloat16),
                      preferred_element_type=jnp.float32)                    # (Vp, d)
        # NNConv bias + ReLU, then GRU cell (gate order r, z, n as in torch)
        x_in = jnp.maximum(agg + nnb_ref[...], 0.0)
        gi = jnp.dot(x_in.astype(jnp.bfloat16), wih_ref[...],
                     preferred_element_type=jnp.float32) + bih_ref[...]
        gh = jnp.dot(hb, whh_ref[...],
                     preferred_element_type=jnp.float32) + bhh_ref[...]
        r = jax.nn.sigmoid(gi[:, 0:d] + gh[:, 0:d])
        z = jax.nn.sigmoid(gi[:, d:2 * d] + gh[:, d:2 * d])
        n = jnp.tanh(gi[:, 2 * d:3 * d] + r * gh[:, 2 * d:3 * d])
        h = (1.0 - z) * n + z * h
    o_ref[...] = h


def pallas_gnn(node_feats_p, edge_feats_p, esrc, sdst, p):
    vp = node_feats_p.shape[0]
    return pl.pallas_call(
        functools.partial(_gnn_kernel, d=NODE_OUT, num_steps=NUM_MP),
        out_shape=jax.ShapeDtypeStruct((vp, NODE_OUT), jnp.float32),
    )(node_feats_p, edge_feats_p, p["proj_w"], p["proj_b"],
      p["edge_w1"], p["edge_b1"], p["edge_w2"], p["edge_b2"],
      p["r_expand"], p["r_sum"], esrc, sdst,
      p["nnconv_bias"], p["gru_w_ih"], p["gru_b_ih"], p["gru_w_hh"], p["gru_b_hh"])


def _att_stack_kernel(node_ref, esrc_ref, edst_ref, scatn_ref, scatb_ref,
                      nm_ref, hm_ref, lbs_ref, lbd_ref, lbb_ref,
                      ln1g_ref, ln1b_ref, wqkv_ref, bqkv_ref,
                      ffw1_ref, ffb1_ref, ffw2_ref, ffb2_ref,
                      ln2g_ref, ln2b_ref,
                      xo_ref, sc_ref,
                      *, n_layers, nb, lseq, heads, d, dk, eps):
    """linearB + unbatch scatter + all Global_Reactivity_Attention layers, fused."""
    nodeb = node_ref[...].astype(jnp.bfloat16)
    # linearB on (node[src] || node[dst]) pairs via one-hot gathers + split weight
    nsrc = jnp.dot(esrc_ref[...], nodeb, preferred_element_type=jnp.float32)
    ndst = jnp.dot(edst_ref[...], nodeb, preferred_element_type=jnp.float32)
    bond = (jnp.dot(nsrc.astype(jnp.bfloat16), lbs_ref[...],
                    preferred_element_type=jnp.float32)
            + jnp.dot(ndst.astype(jnp.bfloat16), lbd_ref[...],
                      preferred_element_type=jnp.float32) + lbb_ref[...])
    # unbatch_mask: scatter atoms + bonds into the padded per-molecule sequences
    x = (jnp.dot(scatn_ref[...], nodeb, preferred_element_type=jnp.float32)
         + jnp.dot(scatb_ref[...], bond.astype(jnp.bfloat16),
                   preferred_element_type=jnp.float32))                     # (nb*lseq, d)

    scale = 1.0 / math.sqrt(dk)
    for l in range(n_layers):
        xn = _ln(x, ln1g_ref[l], ln1b_ref[l], eps)
        # fused QKV: one (n, d) @ (d, 3d) matmul, heads isolated via lane masks
        qkv = jnp.dot(xn.astype(jnp.bfloat16), wqkv_ref[l],
                      preferred_element_type=jnp.float32) + bqkv_ref[l]
        q = qkv[:, 0:d]
        k = qkv[:, d:2 * d]
        v = qkv[:, 2 * d:3 * d]
        blocks = []
        for b in range(nb):
            r0 = b * lseq
            qb = q[r0:r0 + lseq, :]
            kb = k[r0:r0 + lseq, :].astype(jnp.bfloat16)
            vb = v[r0:r0 + lseq, :]
            negm = nm_ref[b]
            acc = jnp.zeros((lseq, d), jnp.float32)
            for hh in range(heads):
                mh = hm_ref[hh]                       # (1, d) head-column mask
                s = jax.lax.dot_general((qb * mh).astype(jnp.bfloat16), kb,
                                        (((1,), (1,)), ((), ())),
                                        preferred_element_type=jnp.float32)
                s = s * scale + negm
                s = s - jnp.max(s, axis=-1, keepdims=True)
                e = jnp.exp(s)
                pmat = e / jnp.sum(e, axis=-1, keepdims=True)   # exact (model output)
                sc_ref[(l * nb + b) * heads + hh] = pmat
                acc = acc + jnp.dot(pmat.astype(jnp.bfloat16),
                                    (vb * mh).astype(jnp.bfloat16),
                                    preferred_element_type=jnp.float32)
            blocks.append(acc)
        # MHA output = concat(head outputs) + LN(x)  (matches LocalRetro/LocalText
        # MultiHeadAttention, which returns output + layer_norm'd input)
        m = jnp.concatenate(blocks, axis=0) + xn
        y = x + m
        f = jnp.maximum(jnp.dot(y.astype(jnp.bfloat16), ffw1_ref[l],
                                preferred_element_type=jnp.float32) + ffb1_ref[l], 0.0)
        f = jnp.dot(f.astype(jnp.bfloat16), ffw2_ref[l],
                    preferred_element_type=jnp.float32) + ffb2_ref[l]
        x = _ln(y + f, ln2g_ref[l], ln2b_ref[l], eps)
    xo_ref[...] = x


def pallas_att_stack(node_out_p, esrc, edst, scat_n, scat_b, neg_mask, p, nb, lseq):
    d = NODE_OUT
    n_seq = nb * lseq
    kern = functools.partial(_att_stack_kernel, n_layers=ATT_LAYERS, nb=nb,
                             lseq=lseq, heads=HEADS, d=d, dk=d // HEADS, eps=1e-6)
    return pl.pallas_call(
        kern,
        out_shape=(jax.ShapeDtypeStruct((n_seq, d), jnp.float32),
                   jax.ShapeDtypeStruct((ATT_LAYERS * nb * HEADS, lseq, lseq),
                                        jnp.float32)),
    )(node_out_p, esrc, edst, scat_n, scat_b, neg_mask, p["att_head_mask"],
      p["linB_ws"], p["linB_wd"], p["linB_b"],
      p["att_ln1_g"], p["att_ln1_b"], p["att_wqkv"], p["att_bqkv"],
      p["att_ff_w1"], p["att_ff_b1"], p["att_ff_w2"], p["att_ff_b2"],
      p["att_ln2_g"], p["att_ln2_b"])


def _text_block_kernel(x_ref, nm_ref, elng_ref, elnb_ref,
                       wqkv_ref, bqkv_ref, hm_ref, wo_ref, wob_ref,
                       alng_ref, alnb_ref, w1_ref, b1_ref, w2_ref, b2_ref,
                       flng_ref, flnb_ref, ho_ref,
                       *, nb, sl, heads, hd, dk, eps):
    """Entire synthetic text-encoder block fused: emb-LN, fused-QKV MHA, hoisted
    Wo, LN, FFN(gelu), LN."""
    x = x_ref[...]                                            # (nb*sl, 768)
    h0 = _ln(x, elng_ref[...], elnb_ref[...], eps)
    qkv = jnp.dot(h0.astype(jnp.bfloat16), wqkv_ref[...],
                  preferred_element_type=jnp.float32) + bqkv_ref[...]
    q = qkv[:, 0:hd]
    k = qkv[:, hd:2 * hd]
    v = qkv[:, 2 * hd:3 * hd]
    scale = 1.0 / math.sqrt(dk)
    blocks = []
    for b in range(nb):
        r0 = b * sl
        qb = q[r0:r0 + sl, :]
        kb = k[r0:r0 + sl, :].astype(jnp.bfloat16)
        vb = v[r0:r0 + sl, :]
        negm = nm_ref[b]
        acc = jnp.zeros((sl, hd), jnp.float32)
        for hh in range(heads):
            mh = hm_ref[hh]                                   # (1, 768) head mask
            s = jax.lax.dot_general((qb * mh).astype(jnp.bfloat16), kb,
                                    (((1,), (1,)), ((), ())),
                                    preferred_element_type=jnp.float32)
            s = s * scale + negm
            s = s - jnp.max(s, axis=-1, keepdims=True)
            e = jnp.exp(s)
            pmat = e * pl.reciprocal(jnp.sum(e, axis=-1, keepdims=True), approx=True)
            acc = acc + jnp.dot(pmat.astype(jnp.bfloat16),
                                (vb * mh).astype(jnp.bfloat16),
                                preferred_element_type=jnp.float32)
        blocks.append(acc)
    ctx = jnp.concatenate(blocks, axis=0)                     # (nb*sl, 768)
    # Wo hoisted out of the head loop: one full-K, 768-lane matmul
    a = jnp.dot(ctx.astype(jnp.bfloat16), wo_ref[...],
                preferred_element_type=jnp.float32) + wob_ref[...]
    h1 = _ln(h0 + a, alng_ref[...], alnb_ref[...], eps)
    # TODO(synk): jax.nn.gelu uses the tanh approximation; HF BERT uses erf GELU.
    f = jax.nn.gelu(jnp.dot(h1.astype(jnp.bfloat16), w1_ref[...],
                            preferred_element_type=jnp.float32) + b1_ref[...])
    f = jnp.dot(f.astype(jnp.bfloat16), w2_ref[...],
                preferred_element_type=jnp.float32) + b2_ref[...]
    ho_ref[...] = _ln(h1 + f, flng_ref[...], flnb_ref[...], eps)


def pallas_text_block(xt, neg_mask, te, nb, sl):
    kern = functools.partial(_text_block_kernel, nb=nb, sl=sl, heads=TEXT_HEADS,
                             hd=TEXT_DIM, dk=TEXT_DIM // TEXT_HEADS, eps=1e-12)
    # TODO(synk): on v7x the text weights could be fp8 to halve the ~9.4 MB
    # weight DMA; kept bf16 here for portability to v5e/v6e.
    return pl.pallas_call(
        kern,
        out_shape=jax.ShapeDtypeStruct((nb * sl, TEXT_DIM), jnp.float32),
        compiler_params=pltpu.CompilerParams(vmem_limit_bytes=32 * 1024 * 1024),
    )(xt, neg_mask, te["emb_ln_g"], te["emb_ln_b"],
      te["wqkv"], te["bqkv"], te["head_mask"], te["wo"], te["bo"],
      te["attn_ln_g"], te["attn_ln_b"],
      te["ff_w1"], te["ff_b1"], te["ff_w2"], te["ff_b2"],
      te["ff_ln_g"], te["ff_ln_b"])


def _heads_kernel(x2_ref, txt_ref,
                  sela_ref, mola_ref, selb_ref, molb_ref,
                  aw1g_ref, aw1t_ref, ab1_ref, aw2_ref, ab2_ref,
                  bw1g_ref, bw1t_ref, bb1_ref, bw2_ref, bb2_ref,
                  ao_ref, bo_ref):
    """unbatch_feats + atom/bond heads.  The 768-wide text contribution is
    computed once per molecule and broadcast to rows with a tiny one-hot matmul."""
    x2b = x2_ref[...].astype(jnp.bfloat16)
    txtb = txt_ref[...].astype(jnp.bfloat16)
    rows_a = jnp.dot(sela_ref[...], x2b, preferred_element_type=jnp.float32)
    rows_b = jnp.dot(selb_ref[...], x2b, preferred_element_type=jnp.float32)
    ta = jnp.dot(txtb, aw1t_ref[...], preferred_element_type=jnp.float32)    # (Bp, d)
    tb = jnp.dot(txtb, bw1t_ref[...], preferred_element_type=jnp.float32)
    ta_rows = jnp.dot(mola_ref[...], ta.astype(jnp.bfloat16),
                      preferred_element_type=jnp.float32)                    # (Vp, d)
    tb_rows = jnp.dot(molb_ref[...], tb.astype(jnp.bfloat16),
                      preferred_element_type=jnp.float32)                    # (Ep, d)
    ha = jnp.maximum(jnp.dot(rows_a.astype(jnp.bfloat16), aw1g_ref[...],
                             preferred_element_type=jnp.float32)
                     + ta_rows + ab1_ref[...], 0.0)
    ao_ref[...] = jnp.dot(ha.astype(jnp.bfloat16), aw2_ref[...],
                          preferred_element_type=jnp.float32) + ab2_ref[...]
    hb = jnp.maximum(jnp.dot(rows_b.astype(jnp.bfloat16), bw1g_ref[...],
                             preferred_element_type=jnp.float32)
                     + tb_rows + bb1_ref[...], 0.0)
    bo_ref[...] = jnp.dot(hb.astype(jnp.bfloat16), bw2_ref[...],
                          preferred_element_type=jnp.float32) + bb2_ref[...]


def pallas_heads(x2, text_feats_p, sel_atom, mol_atom, sel_bond, mol_bond, p):
    vp, ep = sel_atom.shape[0], sel_bond.shape[0]
    return pl.pallas_call(
        _heads_kernel,
        out_shape=(jax.ShapeDtypeStruct((vp, ATOM_T + 1), jnp.float32),
                   jax.ShapeDtypeStruct((ep, BOND_T + 1), jnp.float32)),
    )(x2, text_feats_p, sel_atom, mol_atom, sel_bond, mol_bond,
      p["atom_w1g"], p["atom_w1t"], p["atom_b1"], p["atom_w2"], p["atom_b2"],
      p["bond_w1g"], p["bond_w1t"], p["bond_b1"], p["bond_w2"], p["bond_b2"])


# ============================ parameter construction ==========================
def init_params():
    kg = KeyGen(0)

    def W(*shape, scale=0.1):
        # matmul weights stored once in bf16 (MXU operands, f32 accumulation)
        return (scale * jax.random.normal(kg(), shape)).astype(jnp.bfloat16)

    def bias(n):
        return jnp.zeros((1, n), jnp.float32)

    def gamma(n):
        return jnp.ones((1, n), jnp.float32)

    D, EH = NODE_OUT, EDGE_HIDDEN
    dk = D // HEADS

    # NNConv "expand / block-sum" constants:
    #   R_expand[d, d*D+k] = 1 ; R_sum[d*D+k, k] = 1
    r_exp = np.zeros((D, D * D), np.float32)
    r_sum = np.zeros((D * D, D), np.float32)
    for di in range(D):
        r_exp[di, di * D:(di + 1) * D] = 1.0
        r_sum[di * D + np.arange(D), np.arange(D)] = 1.0
    # head-column masks (1 where a lane belongs to head h)
    hm = np.zeros((HEADS, 1, D), np.float32)
    for hh in range(HEADS):
        hm[hh, 0, hh * dk:(hh + 1) * dk] = 1.0

    p = dict(
        # MPNNGNN
        proj_w=W(NODE_IN, D), proj_b=bias(D),
        edge_w1=W(EDGE_IN, EH), edge_b1=bias(EH),
        edge_w2=W(EH, D * D), edge_b2=bias(D * D),
        r_expand=jnp.asarray(r_exp, jnp.bfloat16),
        r_sum=jnp.asarray(r_sum, jnp.bfloat16),
        nnconv_bias=bias(D),
        gru_w_ih=W(D, 3 * D), gru_b_ih=bias(3 * D),
        gru_w_hh=W(D, 3 * D), gru_b_hh=bias(3 * D),
        # linearB, split into the src / dst halves of the (2D, D) weight
        linB_ws=W(D, D), linB_wd=W(D, D), linB_b=bias(D),
        # graph attention (layer-stacked, fused QKV = [Q | K | V] along lanes)
        att_head_mask=jnp.asarray(hm, jnp.float32),
        att_ln1_g=jnp.ones((ATT_LAYERS, 1, D), jnp.float32),
        att_ln1_b=jnp.zeros((ATT_LAYERS, 1, D), jnp.float32),
        att_wqkv=W(ATT_LAYERS, D, 3 * D),
        att_bqkv=jnp.zeros((ATT_LAYERS, 1, 3 * D), jnp.float32),
        att_ff_w1=W(ATT_LAYERS, D, 2 * D),
        att_ff_b1=jnp.zeros((ATT_LAYERS, 1, 2 * D), jnp.float32),
        att_ff_w2=W(ATT_LAYERS, 2 * D, D),
        att_ff_b2=jnp.zeros((ATT_LAYERS, 1, D), jnp.float32),
        att_ln2_g=jnp.ones((ATT_LAYERS, 1, D), jnp.float32),
        att_ln2_b=jnp.zeros((ATT_LAYERS, 1, D), jnp.float32),
        # atom / bond heads, first layer split into graph- and text-input parts
        atom_w1g=W(D, D), atom_w1t=W(TEXT_DIM, D), atom_b1=bias(D),
        atom_w2=W(D, ATOM_T + 1), atom_b2=bias(ATOM_T + 1),
        bond_w1g=W(D, D), bond_w1t=W(TEXT_DIM, D), bond_b1=bias(D),
        bond_w2=W(D, BOND_T + 1), bond_b2=bias(BOND_T + 1),
    )

    H = TEXT_DIM
    tdk = H // TEXT_HEADS
    thm = np.zeros((TEXT_HEADS, 1, H), np.float32)
    for hh in range(TEXT_HEADS):
        thm[hh, 0, hh * tdk:(hh + 1) * tdk] = 1.0
    p["text"] = dict(
        tok_emb=(0.05 * jax.random.normal(kg(), (VOCAB, H))).astype(jnp.float32),
        pos_emb=(0.05 * jax.random.normal(kg(), (MAX_LEN, H))).astype(jnp.float32),
        emb_ln_g=gamma(H), emb_ln_b=bias(H),
        wqkv=W(H, 3 * H, scale=0.02),
        bqkv=jnp.zeros((1, 3 * H), jnp.float32),
        head_mask=jnp.asarray(thm, jnp.float32),
        wo=W(H, H, scale=0.02), bo=bias(H),
        attn_ln_g=gamma(H), attn_ln_b=bias(H),
        ff_w1=W(H, TEXT_FF, scale=0.02), ff_b1=bias(TEXT_FF),
        ff_w2=W(TEXT_FF, H, scale=0.02), ff_b2=bias(H),
        ff_ln_g=gamma(H), ff_ln_b=bias(H))
    return p


# ================================ forward pass ================================
def localtext_forward(params, node_feats, edge_feats, edge_src, edge_dst,
                      input_ids, attention_mask, n_atoms, n_bonds):
    V = node_feats.shape[0]
    E = edge_feats.shape[0]
    B = len(n_atoms)
    Vp, Ep, Bp = _round_up(V), _round_up(E), _round_up(B)

    src_np = np.asarray(edge_src)
    dst_np = np.asarray(edge_dst)

    # ------- trace-time constants: one-hot gather / scatter / select matrices
    #         (replace all per-graph Python loops, XLA gathers and segment_sums)
    esrc = np.zeros((Ep, Vp), np.float32); esrc[np.arange(E), src_np] = 1.0
    edst = np.zeros((Ep, Vp), np.float32); edst[np.arange(E), dst_np] = 1.0
    sdst = np.ascontiguousarray(edst.T)                       # (Vp, Ep) scatter-sum

    lens = [int(n_atoms[i]) + int(n_bonds[i]) for i in range(B)]
    Lmax = max(lens)
    Lp = _round_up(Lmax)
    a_off = np.cumsum([0] + list(n_atoms))
    e_off = np.cumsum([0] + list(n_bonds))
    scat_n = np.zeros((B * Lp, Vp), np.float32)
    scat_b = np.zeros((B * Lp, Ep), np.float32)
    mol_atom = np.zeros((Vp, Bp), np.float32)
    mol_bond = np.zeros((Ep, Bp), np.float32)
    neg_mask = np.full((B, Lp, Lp), -9e15, np.float32)
    for i in range(B):
        na, nbd = int(n_atoms[i]), int(n_bonds[i])
        scat_n[i * Lp + np.arange(na), a_off[i] + np.arange(na)] = 1.0
        scat_b[i * Lp + na + np.arange(nbd), e_off[i] + np.arange(nbd)] = 1.0
        mol_atom[a_off[i]:a_off[i] + na, i] = 1.0
        mol_bond[e_off[i]:e_off[i] + nbd, i] = 1.0
        neg_mask[i, :, :lens[i]] = 0.0
    sel_atom = np.ascontiguousarray(scat_n.T)                 # (Vp, B*Lp)
    sel_bond = np.ascontiguousarray(scat_b.T)                 # (Ep, B*Lp)
    to_bf = lambda a: jnp.asarray(a, jnp.bfloat16)

    # -------------------- kernel 1: fused MPNNGNN --------------------
    nf_p = jnp.pad(node_feats, ((0, Vp - V), (0, 0)))
    ef_p = jnp.pad(edge_feats, ((0, Ep - E), (0, 0)))
    node_out_p = pallas_gnn(nf_p, ef_p, to_bf(esrc), to_bf(sdst), params)

    # -------- kernel 2: linearB + unbatch_mask + both attention layers --------
    x2, scores = pallas_att_stack(node_out_p, to_bf(esrc), to_bf(edst),
                                  to_bf(scat_n), to_bf(scat_b),
                                  jnp.asarray(neg_mask), params, B, Lp)
    attention_score = scores.reshape(ATT_LAYERS, B, HEADS, Lp, Lp)[..., :Lmax, :Lmax]

    # -------------------- kernel 3: text encoder --------------------
    # TODO(synk): pretrained HuggingFace encoder replaced by a deterministic
    # 1-layer transformer encoder producing the same (B, 768) CLS feature.
    te = params["text"]
    tok = te["tok_emb"][input_ids]                            # (B, S, 768) gather
    xt = (tok + te["pos_emb"][None, :, :]).reshape(B * MAX_LEN, TEXT_DIM)
    am = np.asarray(attention_mask, np.float32)
    neg_t = np.where(am[:, None, :] > 0, 0.0, -9e15).astype(np.float32)
    neg_t = np.ascontiguousarray(np.broadcast_to(neg_t, (B, MAX_LEN, MAX_LEN)))
    h2 = pallas_text_block(xt, jnp.asarray(neg_t), te, B, MAX_LEN)
    text_feats = h2.reshape(B, MAX_LEN, TEXT_DIM)[:, 0, :]    # CLS -> (B, 768)
    text_feats_p = jnp.pad(text_feats, ((0, Bp - B), (0, 0)))

    # ------------ kernel 4: unbatch_feats + atom/bond heads (Dropout = id) ----
    atom_outs_p, bond_outs_p = pallas_heads(x2, text_feats_p,
                                            to_bf(sel_atom), to_bf(mol_atom),
                                            to_bf(sel_bond), to_bf(mol_bond), params)
    return atom_outs_p[:V], bond_outs_p[:E], attention_score


# ===================================== main ===================================
if __name__ == "__main__":
    params = init_params()

    # small synthetic batched graph: 2 molecules
    n_atoms = [5, 4]
    edges_local = [
        [(0, 1), (1, 0), (1, 2), (2, 1), (2, 3), (3, 2), (3, 4), (4, 3)],
        [(0, 1), (1, 0), (1, 2), (2, 1), (2, 3), (3, 2)],
    ]
    n_bonds = [len(e) for e in edges_local]
    offs = np.cumsum([0] + n_atoms)
    src, dst = [], []
    for i, es in enumerate(edges_local):
        for (s, d) in es:
            src.append(s + int(offs[i]))
            dst.append(d + int(offs[i]))
    edge_src = jnp.array(src, jnp.int32)
    edge_dst = jnp.array(dst, jnp.int32)
    V, E = int(offs[-1]), len(src)

    ik = jax.random.split(jax.random.PRNGKey(0), 4)
    node_feats = jax.random.normal(ik[0], (V, NODE_IN), jnp.float32)
    edge_feats = jax.random.normal(ik[1], (E, EDGE_IN), jnp.float32)
    input_ids = jax.random.randint(ik[2], (len(n_atoms), MAX_LEN), 0, VOCAB)
    attention_mask = jnp.array([[1] * MAX_LEN,
                                [1] * (MAX_LEN - 2) + [0, 0]], jnp.int32)

    atom_outs, bond_outs, att_score = localtext_forward(
        params, node_feats, edge_feats, edge_src, edge_dst,
        input_ids, attention_mask, n_atoms, n_bonds)
    jax.block_until_ready((atom_outs, bond_outs, att_score))

    assert atom_outs.shape == (V, ATOM_T + 1)
    assert bond_outs.shape == (E, BOND_T + 1)
    Lmax = max(n_atoms[i] + n_bonds[i] for i in range(len(n_atoms)))
    assert att_score.shape == (ATT_LAYERS, len(n_atoms), HEADS, Lmax, Lmax)
    assert bool(jnp.all(jnp.isfinite(atom_outs))) and bool(jnp.all(jnp.isfinite(bond_outs)))
    assert bool(jnp.all(jnp.isfinite(att_score)))
    print("KERNEL_OK")
</pallas_src>

<mosaic_0001>
module attributes {stable_mosaic.version = 11 : i64} {
  func.func @_gnn_kernel(%arg0: memref<16x16xf32, #tpu.memory_space<vmem>>, %arg1: memref<16x8xf32, #tpu.memory_space<vmem>>, %arg2: memref<16x32xbf16, #tpu.memory_space<vmem>>, %arg3: memref<1x32xf32, #tpu.memory_space<vmem>>, %arg4: memref<8x32xbf16, #tpu.memory_space<vmem>>, %arg5: memref<1x32xf32, #tpu.memory_space<vmem>>, %arg6: memref<32x1024xbf16, #tpu.memory_space<vmem>>, %arg7: memref<1x1024xf32, #tpu.memory_space<vmem>>, %arg8: memref<32x1024xbf16, #tpu.memory_space<vmem>>, %arg9: memref<1024x32xbf16, #tpu.memory_space<vmem>>, %arg10: memref<16x16xbf16, #tpu.memory_space<vmem>>, %arg11: memref<16x16xbf16, #tpu.memory_space<vmem>>, %arg12: memref<1x32xf32, #tpu.memory_space<vmem>>, %arg13: memref<32x96xbf16, #tpu.memory_space<vmem>>, %arg14: memref<1x96xf32, #tpu.memory_space<vmem>>, %arg15: memref<32x96xbf16, #tpu.memory_space<vmem>>, %arg16: memref<1x96xf32, #tpu.memory_space<vmem>>, %arg17: memref<16x32xf32, #tpu.memory_space<vmem>>) attributes {dimension_semantics = [], scalar_prefetch = 0 : i64, scratch_operands = 0 : i64, tpu.core_type = #tpu.core_type<tc>} {
    %c0 = arith.constant 0 : index
    %c0_0 = arith.constant 0 : index
    %0 = vector.load %arg1[%c0, %c0_0] : memref<16x8xf32, #tpu.memory_space<vmem>>, vector<16x8xf32>
    %1 = arith.truncf %0 : vector<16x8xf32> to vector<16x8xbf16>
    %c0_1 = arith.constant 0 : index
    %c0_2 = arith.constant 0 : index
    %2 = vector.load %arg4[%c0_1, %c0_2] : memref<8x32xbf16, #tpu.memory_space<vmem>>, vector<8x32xbf16>
    %cst = arith.constant dense<0.000000e+00> : vector<16x32xf32>
    %3 = tpu.matmul %1, %2, %cst {dimension_numbers = #tpu.dot_dimension_numbers<[1], [0], [0], [1], [0, 0, 1, 1], [], []>} : vector<16x8xbf16>, vector<8x32xbf16>, vector<16x32xf32> -> vector<16x32xf32>
    %c0_3 = arith.constant 0 : index
    %c0_4 = arith.constant 0 : index
    %4 = vector.load %arg5[%c0_3, %c0_4] : memref<1x32xf32, #tpu.memory_space<vmem>>, vector<1x32xf32>
    %5 = vector.broadcast %4 : vector<1x32xf32> to vector<16x32xf32>
    %6 = arith.addf %3, %5 : vector<16x32xf32>
    %cst_5 = arith.constant 0.000000e+00 : f32
    %7 = vector.broadcast %cst_5 : f32 to vector<16x32xf32>
    %8 = arith.maximumf %6, %7 : vector<16x32xf32>
    %9 = arith.truncf %8 : vector<16x32xf32> to vector<16x32xbf16>
    %c0_6 = arith.constant 0 : index
    %c0_7 = arith.constant 0 : index
    %10 = vector.load %arg6[%c0_6, %c0_7] : memref<32x1024xbf16, #tpu.memory_space<vmem>>, vector<32x1024xbf16>
    %cst_8 = arith.constant dense<0.000000e+00> : vector<16x1024xf32>
    %11 = tpu.matmul %9, %10, %cst_8 {dimension_numbers = #tpu.dot_dimension_numbers<[1], [0], [0], [1], [0, 0, 1, 1], [], []>} : vector<16x32xbf16>, vector<32x1024xbf16>, vector<16x1024xf32> -> vector<16x1024xf32>
    %c0_9 = arith.constant 0 : index
    %c0_10 = arith.constant 0 : index
    %12 = vector.load %arg7[%c0_9, %c0_10] : memref<1x1024xf32, #tpu.memory_space<vmem>>, vector<1x1024xf32>
    %13 = vector.broadcast %12 : vector<1x1024xf32> to vector<16x1024xf32>
    %14 = arith.addf %11, %13 : vector<16x1024xf32>
    %c0_11 = arith.constant 0 : index
    %c0_12 = arith.constant 0 : index
    %15 = vector.load %arg0[%c0_11, %c0_12] : memref<16x16xf32, #tpu.memory_space<vmem>>, vector<16x16xf32>
    %16 = arith.truncf %15 : vector<16x16xf32> to vector<16x16xbf16>
    %c0_13 = arith.constant 0 : index
    %c0_14 = arith.constant 0 : index
    %17 = vector.load %arg2[%c0_13, %c0_14] : memref<16x32xbf16, #tpu.memory_space<vmem>>, vector<16x32xbf16>
    %cst_15 = arith.constant dense<0.000000e+00> : vector<16x32xf32>
    %18 = tpu.matmul %16, %17, %cst_15 {dimension_numbers = #tpu.dot_dimension_numbers<[1], [0], [0], [1], [0, 0, 1, 1], [], []>} : vector<16x16xbf16>, vector<16x32xbf16>, vector<16x32xf32> -> vector<16x32xf32>
    %c0_16 = arith.constant 0 : index
    %c0_17 = arith.constant 0 : index
    %19 = vector.load %arg3[%c0_16, %c0_17] : memref<1x32xf32, #tpu.memory_space<vmem>>, vector<1x32xf32>
    %20 = vector.broadcast %19 : vector<1x32xf32> to vector<16x32xf32>
    %21 = arith.addf %18, %20 : vector<16x32xf32>
    %cst_18 = arith.constant 0.000000e+00 : f32
    %22 = vector.broadcast %cst_18 : f32 to vector<16x32xf32>
    %23 = arith.maximumf %21, %22 : vector<16x32xf32>
    %c0_19 = arith.constant 0 : index
    %c0_20 = arith.constant 0 : index
    %24 = vector.load %arg10[%c0_19, %c0_20] : memref<16x16xbf16, #tpu.memory_space<vmem>>, vector<16x16xbf16>
    %c0_21 = arith.constant 0 : index
    %c0_22 = arith.constant 0 : index
    %25 = vector.load %arg11[%c0_21, %c0_22] : memref<16x16xbf16, #tpu.memory_space<vmem>>, vector<16x16xbf16>
    %c0_23 = arith.constant 0 : index
    %c0_24 = arith.constant 0 : index
    %26 = vector.load %arg8[%c0_23, %c0_24] : memref<32x1024xbf16, #tpu.memory_space<vmem>>, vector<32x1024xbf16>
    %c0_25 = arith.constant 0 : index
    %c0_26 = arith.constant 0 : index
    %27 = vector.load %arg9[%c0_25, %c0_26] : memref<1024x32xbf16, #tpu.memory_space<vmem>>, vector<1024x32xbf16>
    %28 = arith.truncf %23 : vector<16x32xf32> to vector<16x32xbf16>
    %cst_27 = arith.constant dense<0.000000e+00> : vector<16x32xf32>
    %29 = tpu.matmul %24, %28, %cst_27 {dimension_numbers = #tpu.dot_dimension_numbers<[1], [0], [0], [1], [0, 0, 1, 1], [], []>} : vector<16x16xbf16>, vector<16x32xbf16>, vector<16x32xf32> -> vector<16x32xf32>
    %30 = arith.truncf %29 : vector<16x32xf32> to vector<16x32xbf16>
    %cst_28 = arith.constant dense<0.000000e+00> : vector<16x1024xf32>
    %31 = tpu.matmul %30, %26, %cst_28 {dimension_numbers = #tpu.dot_dimension_numbers<[1], [0], [0], [1], [0, 0, 1, 1], [], []>} : vector<16x32xbf16>, vector<32x1024xbf16>, vector<16x1024xf32> -> vector<16x1024xf32>
    %32 = arith.mulf %31, %14 : vector<16x1024xf32>
    %33 = arith.truncf %32 : vector<16x1024xf32> to vector<16x1024xbf16>
    %cst_29 = arith.constant dense<0.000000e+00> : vector<16x32xf32>
    %34 = tpu.matmul %33, %27, %cst_29 {dimension_numbers = #tpu.dot_dimension_numbers<[1], [0], [0], [1], [0, 0, 1, 1], [], []>} : vector<16x1024xbf16>, vector<1024x32xbf16>, vector<16x32xf32> -> vector<16x32xf32>
    %35 = arith.truncf %34 : vector<16x32xf32> to vector<16x32xbf16>
    %cst_30 = arith.constant dense<0.000000e+00> : vector<16x32xf32>
    %36 = tpu.matmul %25, %35, %cst_30 {dimension_numbers = #tpu.dot_dimension_numbers<[1], [0], [0], [1], [0, 0, 1, 1], [], []>} : vector<16x16xbf16>, vector<16x32xbf16>, vector<16x32xf32> -> vector<16x32xf32>
    %c0_31 = arith.constant 0 : index
    %c0_32 = arith.constant 0 : index
    %37 = vector.load %arg12[%c0_31, %c0_32] : memref<1x32xf32, #tpu.memory_space<vmem>>, vector<1x32xf32>
    %38 = vector.broadcast %37 : vector<1x32xf32> to vector<16x32xf32>
    %39 = arith.addf %36, %38 : vector<16x32xf32>
    %cst_33 = arith.constant 0.000000e+00 : f32
    %40 = vector.broadcast %cst_33 : f32 to vector<16x32xf32>
    %41 = arith.maximumf %39, %40 : vector<16x32xf32>
    %42 = arith.truncf %41 : vector<16x32xf32> to vector<16x32xbf16>
    %c0_34 = arith.constant 0 : index
    %c0_35 = arith.constant 0 : index
    %43 = vector.load %arg13[%c0_34, %c0_35] : memref<32x96xbf16, #tpu.memory_space<vmem>>, vector<32x96xbf16>
    %cst_36 = arith.constant dense<0.000000e+00> : vector<16x96xf32>
    %44 = tpu.matmul %42, %43, %cst_36 {dimension_numbers = #tpu.dot_dimension_numbers<[1], [0], [0], [1], [0, 0, 1, 1], [], []>} : vector<16x32xbf16>, vector<32x96xbf16>, vector<16x96xf32> -> vector<16x96xf32>
    %c0_37 = arith.constant 0 : index
    %c0_38 = arith.constant 0 : index
    %45 = vector.load %arg14[%c0_37, %c0_38] : memref<1x96xf32, #tpu.memory_space<vmem>>, vector<1x96xf32>
    %46 = vector.broadcast %45 : vector<1x96xf32> to vector<16x96xf32>
    %47 = arith.addf %44, %46 : vector<16x96xf32>
    %c0_39 = arith.constant 0 : index
    %c0_40 = arith.constant 0 : index
    %48 = vector.load %arg15[%c0_39, %c0_40] : memref<32x96xbf16, #tpu.memory_space<vmem>>, vector<32x96xbf16>
    %cst_41 = arith.constant dense<0.000000e+00> : vector<16x96xf32>
    %49 = tpu.matmul %28, %48, %cst_41 {dimension_numbers = #tpu.dot_dimension_numbers<[1], [0], [0], [1], [0, 0, 1, 1], [], []>} : vector<16x32xbf16>, vector<32x96xbf16>, vector<16x96xf32> -> vector<16x96xf32>
    %c0_42 = arith.constant 0 : index
    %c0_43 = arith.constant 0 : index
    %50 = vector.load %arg16[%c0_42, %c0_43] : memref<1x96xf32, #tpu.memory_space<vmem>>, vector<1x96xf32>
    %51 = vector.broadcast %50 : vector<1x96xf32> to vector<16x96xf32>
    %52 = arith.addf %49, %51 : vector<16x96xf32>
    %53 = vector.extract_strided_slice %47 {offsets = [0, 0], sizes = [16, 32], strides = [1, 1]} : vector<16x96xf32> to vector<16x32xf32>
    %54 = vector.extract_strided_slice %52 {offsets = [0, 0], sizes = [16, 32], strides = [1, 1]} : vector<16x96xf32> to vector<16x32xf32>
    %55 = arith.addf %53, %54 : vector<16x32xf32>
    %56 = arith.negf %55 : vector<16x32xf32>
    %57 = math.exp %56 : vector<16x32xf32>
    %cst_44 = arith.constant 1.000000e+00 : f32
    %58 = vector.broadcast %cst_44 : f32 to vector<16x32xf32>
    %59 = arith.addf %58, %57 : vector<16x32xf32>
    %60 = arith.divf %58, %59 : vector<16x32xf32>
    %61 = vector.extract_strided_slice %47 {offsets = [0, 32], sizes = [16, 32], strides = [1, 1]} : vector<16x96xf32> to vector<16x32xf32>
    %62 = vector.extract_strided_slice %52 {offsets = [0, 32], sizes = [16, 32], strides = [1, 1]} : vector<16x96xf32> to vector<16x32xf32>
    %63 = arith.addf %61, %62 : vector<16x32xf32>
    %64 = arith.negf %63 : vector<16x32xf32>
    %65 = math.exp %64 : vector<16x32xf32>
    %cst_45 = arith.constant 1.000000e+00 : f32
    %66 = vector.broadcast %cst_45 : f32 to vector<16x32xf32>
    %67 = arith.addf %66, %65 : vector<16x32xf32>
    %68 = arith.divf %66, %67 : vector<16x32xf32>
    %69 = vector.extract_strided_slice %47 {offsets = [0, 64], sizes = [16, 32], strides = [1, 1]} : vector<16x96xf32> to vector<16x32xf32>
    %70 = vector.extract_strided_slice %52 {offsets = [0, 64], sizes = [16, 32], strides = [1, 1]} : vector<16x96xf32> to vector<16x32xf32>
    %71 = arith.mulf %60, %70 : vector<16x32xf32>
    %72 = arith.addf %69, %71 : vector<16x32xf32>
    %73 = math.tanh %72 : vector<16x32xf32>
    %cst_46 = arith.constant 1.000000e+00 : f32
    %74 = vector.broadcast %cst_46 : f32 to vector<16x32xf32>
    %75 = arith.subf %74, %68 : vector<16x32xf32>
    %76 = arith.mulf %75, %73 : vector<16x32xf32>
    %77 = arith.mulf %68, %23 : vector<16x32xf32>
    %78 = arith.addf %76, %77 : vector<16x32xf32>
    %79 = arith.truncf %78 : vector<16x32xf32> to vector<16x32xbf16>
    %cst_47 = arith.constant dense<0.000000e+00> : vector<16x32xf32>
    %80 = tpu.matmul %24, %79, %cst_47 {dimension_numbers = #tpu.dot_dimension_numbers<[1], [0], [0], [1], [0, 0, 1, 1], [], []>} : vector<16x16xbf16>, vector<16x32xbf16>, vector<16x32xf32> -> vector<16x32xf32>
    %81 = arith.truncf %80 : vector<16x32xf32> to vector<16x32xbf16>
    %cst_48 = arith.constant dense<0.000000e+00> : vector<16x1024xf32>
    %82 = tpu.matmul %81, %26, %cst_48 {dimension_numbers = #tpu.dot_dimension_numbers<[1], [0], [0], [1], [0, 0, 1, 1], [], []>} : vector<16x32xbf16>, vector<32x1024xbf16>, vector<16x1024xf32> -> vector<16x1024xf32>
    %83 = arith.mulf %82, %14 : vector<16x1024xf32>
    %84 = arith.truncf %83 : vector<16x1024xf32> to vector<16x1024xbf16>
    %cst_49 = arith.constant dense<0.000000e+00> : vector<16x32xf32>
    %85 = tpu.matmul %84, %27, %cst_49 {dimension_numbers = #tpu.dot_dimension_numbers<[1], [0], [0], [1], [0, 0, 1, 1], [], []>} : vector<16x1024xbf16>, vector<1024x32xbf16>, vector<16x32xf32> -> vector<16x32xf32>
    %86 = arith.truncf %85 : vector<16x32xf32> to vector<16x32xbf16>
    %cst_50 = arith.constant dense<0.000000e+00> : vector<16x32xf32>
    %87 = tpu.matmul %25, %86, %cst_50 {dimension_numbers = #tpu.dot_dimension_numbers<[1], [0], [0], [1], [0, 0, 1, 1], [], []>} : vector<16x16xbf16>, vector<16x32xbf16>, vector<16x32xf32> -> vector<16x32xf32>
    %c0_51 = arith.constant 0 : index
    %c0_52 = arith.constant 0 : index
    %88 = vector.load %arg12[%c0_51, %c0_52] : memref<1x32xf32, #tpu.memory_space<vmem>>, vector<1x32xf32>
    %89 = vector.broadcast %88 : vector<1x32xf32> to vector<16x32xf32>
    %90 = arith.addf %87, %89 : vector<16x32xf32>
    %cst_53 = arith.constant 0.000000e+00 : f32
    %91 = vector.broadcast %cst_53 : f32 to vector<16x32xf32>
    %92 = arith.maximumf %90, %91 : vector<16x32xf32>
    %93 = arith.truncf %92 : vector<16x32xf32> to vector<16x32xbf16>
    %c0_54 = arith.constant 0 : index
    %c0_55 = arith.constant 0 : index
    %94 = vector.load %arg13[%c0_54, %c0_55] : memref<32x96xbf16, #tpu.memory_space<vmem>>, vector<32x96xbf16>
    %cst_56 = arith.constant dense<0.000000e+00> : vector<16x96xf32>
    %95 = tpu.matmul %93, %94, %cst_56 {dimension_numbers = #tpu.dot_dimension_numbers<[1], [0], [0], [1], [0, 0, 1, 1], [], []>} : vector<16x32xbf16>, vector<32x96xbf16>, vector<16x96xf32> -> vector<16x96xf32>
    %c0_57 = arith.constant 0 : index
    %c0_58 = arith.constant 0 : index
    %96 = vector.load %arg14[%c0_57, %c0_58] : memref<1x96xf32, #tpu.memory_space<vmem>>, vector<1x96xf32>
    %97 = vector.broadcast %96 : vector<1x96xf32> to vector<16x96xf32>
    %98 = arith.addf %95, %97 : vector<16x96xf32>
    %c0_59 = arith.constant 0 : index
    %c0_60 = arith.constant 0 : index
    %99 = vector.load %arg15[%c0_59, %c0_60] : memref<32x96xbf16, #tpu.memory_space<vmem>>, vector<32x96xbf16>
    %cst_61 = arith.constant dense<0.000000e+00> : vector<16x96xf32>
    %100 = tpu.matmul %79, %99, %cst_61 {dimension_numbers = #tpu.dot_dimension_numbers<[1], [0], [0], [1], [0, 0, 1, 1], [], []>} : vector<16x32xbf16>, vector<32x96xbf16>, vector<16x96xf32> -> vector<16x96xf32>
    %c0_62 = arith.constant 0 : index
    %c0_63 = arith.constant 0 : index
    %101 = vector.load %arg16[%c0_62, %c0_63] : memref<1x96xf32, #tpu.memory_space<vmem>>, vector<1x96xf32>
    %102 = vector.broadcast %101 : vector<1x96xf32> to vector<16x96xf32>
    %103 = arith.addf %100, %102 : vector<16x96xf32>
    %104 = vector.extract_strided_slice %98 {offsets = [0, 0], sizes = [16, 32], strides = [1, 1]} : vector<16x96xf32> to vector<16x32xf32>
    %105 = vector.extract_strided_slice %103 {offsets = [0, 0], sizes = [16, 32], strides = [1, 1]} : vector<16x96xf32> to vector<16x32xf32>
    %106 = arith.addf %104, %105 : vector<16x32xf32>
    %107 = arith.negf %106 : vector<16x32xf32>
    %108 = math.exp %107 : vector<16x32xf32>
    %cst_64 = arith.constant 1.000000e+00 : f32
    %109 = vector.broadcast %cst_64 : f32 to vector<16x32xf32>
    %110 = arith.addf %109, %108 : vector<16x32xf32>
    %111 = arith.divf %109, %110 : vector<16x32xf32>
    %112 = vector.extract_strided_slice %98 {offsets = [0, 32], sizes = [16, 32], strides = [1, 1]} : vector<16x96xf32> to vector<16x32xf32>
    %113 = vector.extract_strided_slice %103 {offsets = [0, 32], sizes = [16, 32], strides = [1, 1]} : vector<16x96xf32> to vector<16x32xf32>
    %114 = arith.addf %112, %113 : vector<16x32xf32>
    %115 = arith.negf %114 : vector<16x32xf32>
    %116 = math.exp %115 : vector<16x32xf32>
    %cst_65 = arith.constant 1.000000e+00 : f32
    %117 = vector.broadcast %cst_65 : f32 to vector<16x32xf32>
    %118 = arith.addf %117, %116 : vector<16x32xf32>
    %119 = arith.divf %117, %118 : vector<16x32xf32>
    %120 = vector.extract_strided_slice %98 {offsets = [0, 64], sizes = [16, 32], strides = [1, 1]} : vector<16x96xf32> to vector<16x32xf32>
    %121 = vector.extract_strided_slice %103 {offsets = [0, 64], sizes = [16, 32], strides = [1, 1]} : vector<16x96xf32> to vector<16x32xf32>
    %122 = arith.mulf %111, %121 : vector<16x32xf32>
    %123 = arith.addf %120, %122 : vector<16x32xf32>
    %124 = math.tanh %123 : vector<16x32xf32>
    %cst_66 = arith.constant 1.000000e+00 : f32
    %125 = vector.broadcast %cst_66 : f32 to vector<16x32xf32>
    %126 = arith.subf %125, %119 : vector<16x32xf32>
    %127 = arith.mulf %126, %124 : vector<16x32xf32>
    %128 = arith.mulf %119, %78 : vector<16x32xf32>
    %129 = arith.addf %127, %128 : vector<16x32xf32>
    %c0_67 = arith.constant 0 : index
    %c0_68 = arith.constant 0 : index
    %130 = vector.load %arg17[%c0_67, %c0_68] : memref<16x32xf32, #tpu.memory_space<vmem>>, vector<16x32xf32>
    tpu.vector_store %arg17[%c0_67, %c0_68], %129 {strides = array<i32>} : memref<16x32xf32, #tpu.memory_space<vmem>>, vector<16x32xf32>,
    return
  }
}

</mosaic_0001>

<llo_original>
// kernel: tpu_custom_call.1
$region0: #{tpu_custom_call.1}
  #allocation0 [shape = 'u32[]', space=smem, size = 0x4, offset = 0x4, fixed_abs, tag = 'smem constant byte address 0x4 - core index']
  #allocation1 [shape = 'u32[144,128]{1,0:T(1,128)}', space=vmem, size = 0x12000, scoped, tag = 'internal scratch']
  %s0 = inlined_call_operand.vmem [shape: f32[16,16], index: 0, kind: input, shape index: {}]
  %s1 = inlined_call_operand.vmem [shape: f32[16,8], index: 1, kind: input, shape index: {}]
  %s2 = inlined_call_operand.vmem [shape: bf16[16,32], index: 2, kind: input, shape index: {}]
  %s3 = inlined_call_operand.vmem [shape: f32[1,32], index: 3, kind: input, shape index: {}]
  %s4 = inlined_call_operand.vmem [shape: bf16[8,32], index: 4, kind: input, shape index: {}]
  %s5 = inlined_call_operand.vmem [shape: f32[1,32], index: 5, kind: input, shape index: {}]
  %s6 = inlined_call_operand.vmem [shape: bf16[32,1024], index: 6, kind: input, shape index: {}]
  %s7 = inlined_call_operand.vmem [shape: f32[1,1024], index: 7, kind: input, shape index: {}]
  %s8 = inlined_call_operand.vmem [shape: bf16[32,1024], index: 8, kind: input, shape index: {}]
  %s9 = inlined_call_operand.vmem [shape: bf16[1024,32], index: 9, kind: input, shape index: {}]
  %s10 = inlined_call_operand.vmem [shape: bf16[16,16], index: 10, kind: input, shape index: {}]
  %s11 = inlined_call_operand.vmem [shape: bf16[16,16], index: 11, kind: input, shape index: {}]
  %s12 = inlined_call_operand.vmem [shape: f32[1,32], index: 12, kind: input, shape index: {}]
  %s13 = inlined_call_operand.vmem [shape: bf16[32,96], index: 13, kind: input, shape index: {}]
  %s14 = inlined_call_operand.vmem [shape: f32[1,96], index: 14, kind: input, shape index: {}]
  %s15 = inlined_call_operand.vmem [shape: bf16[32,96], index: 15, kind: input, shape index: {}]
  %s16 = inlined_call_operand.vmem [shape: f32[1,96], index: 16, kind: input, shape index: {}]
  %s17 = inlined_call_operand.hbm [shape: f32[16,32], index: 17, kind: output, shape index: {}]
  %s18 = sld [smem:[#allocation0]]
  $region78: #{tpu_custom_call.1} parent=0
    _
  %s20 = ssub.s32 1, %s18
  %s21 = scalar_select 0, %s20, %s18
  $region1: #{tpu_custom_call.1} parent=0
    #allocation2 [shape = 'u8[8192]{0}', space=vmem, size = 0x2000, scoped, tag = 'output window, operand 0, single buffered']
    #allocation3 [shape = 's32[1]{0}', space=sflag, size = 0x4, scoped, tag = 'scoped memory for tpu_custom_call.1']
    %22 = vsyncpa [#allocation3], 0
    // Predicated region
    $region2: #{tpu_custom_call.1} parent=1 // pred_check
      _
    $region3: #{tpu_custom_call.1} parent=1 // pred_check_branch
      %24 = sbr.rel (0) target = $region5
    $region4: #{tpu_custom_call.1} parent=1 // pred_region
      _
    $region5: #{tpu_custom_call.1} parent=1 // pred_fallthru
      _
    // Predicated region
    $region6: #{tpu_custom_call.1} parent=1 // pred_check
      _
    $region7: #{tpu_custom_call.1} parent=1 // pred_check_branch
      %26 = sbr.rel (0) target = $region9
    $region8: #{tpu_custom_call.1} parent=1 // pred_region
      _
    $region9: #{tpu_custom_call.1} parent=1 // pred_fallthru
      _
    // Predicated region
    $region10: #{tpu_custom_call.1} parent=1 // pred_check
      _
    $region11: #{tpu_custom_call.1} parent=1 // pred_check_branch
      %28 = sbr.rel (0) target = $region13
    $region12: #{tpu_custom_call.1} parent=1 // pred_region
      _
    $region13: #{tpu_custom_call.1} parent=1 // pred_fallthru
      _
    // Predicated region
    $region14: #{tpu_custom_call.1} parent=1 // pred_check
      _
    $region15: #{tpu_custom_call.1} parent=1 // pred_check_branch
      %30 = sbr.rel (0) target = $region17
    $region16: #{tpu_custom_call.1} parent=1 // pred_region
      _
    $region17: #{tpu_custom_call.1} parent=1 // pred_fallthru
      _
    // Predicated region
    $region18: #{tpu_custom_call.1} parent=1 // pred_check
      _
    $region19: #{tpu_custom_call.1} parent=1 // pred_check_branch
      %32 = sbr.rel (0) target = $region21
    $region20: #{tpu_custom_call.1} parent=1 // pred_region
      _
    $region21: #{tpu_custom_call.1} parent=1 // pred_fallthru
      _
    // Predicated region
    $region22: #{tpu_custom_call.1} parent=1 // pred_check
      _
    $region23: #{tpu_custom_call.1} parent=1 // pred_check_branch
      %34 = sbr.rel (0) target = $region25
    $region24: #{tpu_custom_call.1} parent=1 // pred_region
      _
    $region25: #{tpu_custom_call.1} parent=1 // pred_fallthru
      _
    // Predicated region
    $region26: #{tpu_custom_call.1} parent=1 // pred_check
      _
    $region27: #{tpu_custom_call.1} parent=1 // pred_check_branch
      %36 = sbr.rel (0) target = $region29
    $region28: #{tpu_custom_call.1} parent=1 // pred_region
      _
    $region29: #{tpu_custom_call.1} parent=1 // pred_fallthru
      _
    // Predicated region
    $region30: #{tpu_custom_call.1} parent=1 // pred_check
      _
    $region31: #{tpu_custom_call.1} parent=1 // pred_check_branch
      %38 = sbr.rel (0) target = $region33
    $region32: #{tpu_custom_call.1} parent=1 // pred_region
      _
    $region33: #{tpu_custom_call.1} parent=1 // pred_fallthru
      _
    // Predicated region
    $region34: #{tpu_custom_call.1} parent=1 // pred_check
      _
    $region35: #{tpu_custom_call.1} parent=1 // pred_check_branch
      %40 = sbr.rel (0) target = $region37
    $region36: #{tpu_custom_call.1} parent=1 // pred_region
      _
    $region37: #{tpu_custom_call.1} parent=1 // pred_fallthru
      _
    // Predicated region
    $region38: #{tpu_custom_call.1} parent=1 // pred_check
      _
    $region39: #{tpu_custom_call.1} parent=1 // pred_check_branch
      %42 = sbr.rel (0) target = $region41
    $region40: #{tpu_custom_call.1} parent=1 // pred_region
      _
    $region41: #{tpu_custom_call.1} parent=1 // pred_fallthru
      _
    // Predicated region
    $region42: #{tpu_custom_call.1} parent=1 // pred_check
      _
    $region43: #{tpu_custom_call.1} parent=1 // pred_check_branch
      %44 = sbr.rel (0) target = $region45
    $region44: #{tpu_custom_call.1} parent=1 // pred_region
      _
    $region45: #{tpu_custom_call.1} parent=1 // pred_fallthru
      _
    // Predicated region
    $region46: #{tpu_custom_call.1} parent=1 // pred_check
      _
    $region47: #{tpu_custom_call.1} parent=1 // pred_check_branch
      %46 = sbr.rel (0) target = $region49
    $region48: #{tpu_custom_call.1} parent=1 // pred_region
      _
    $region49: #{tpu_custom_call.1} parent=1 // pred_fallthru
      _
    // Predicated region
    $region50: #{tpu_custom_call.1} parent=1 // pred_check
      _
    $region51: #{tpu_custom_call.1} parent=1 // pred_check_branch
      %48 = sbr.rel (0) target = $region53
    $region52: #{tpu_custom_call.1} parent=1 // pred_region
      _
    $region53: #{tpu_custom_call.1} parent=1 // pred_fallthru
      _
    // Predicated region
    $region54: #{tpu_custom_call.1} parent=1 // pred_check
      _
    $region55: #{tpu_custom_call.1} parent=1 // pred_check_branch
      %50 = sbr.rel (0) target = $region57
    $region56: #{tpu_custom_call.1} parent=1 // pred_region
      _
    $region57: #{tpu_custom_call.1} parent=1 // pred_fallthru
      _
    // Predicated region
    $region58: #{tpu_custom_call.1} parent=1 // pred_check
      _
    $region59: #{tpu_custom_call.1} parent=1 // pred_check_branch
      %52 = sbr.rel (0) target = $region61
    $region60: #{tpu_custom_call.1} parent=1 // pred_region
      _
    $region61: #{tpu_custom_call.1} parent=1 // pred_fallthru
      _
    // Predicated region
    $region62: #{tpu_custom_call.1} parent=1 // pred_check
      _
    $region63: #{tpu_custom_call.1} parent=1 // pred_check_branch
      %54 = sbr.rel (0) target = $region65
    $region64: #{tpu_custom_call.1} parent=1 // pred_region
      _
    $region65: #{tpu_custom_call.1} parent=1 // pred_fallthru
      _
    // Predicated region
    $region66: #{tpu_custom_call.1} parent=1 // pred_check
      _
    $region67: #{tpu_custom_call.1} parent=1 // pred_check_branch
      %56 = sbr.rel (0) target = $region69
    $region68: #{tpu_custom_call.1} parent=1 // pred_region
      _
    $region69: #{tpu_custom_call.1} parent=1 // pred_fallthru
      _
    %v58 = vld [vmem:[%s1] sm:$0xff]
    %v59 = vld [vmem:[%s1 + $0x8] sm:$0xff]
    %v60 = vpack.c.bf16 %v59, %v58
    %v61 = vld [vmem:[%s4] sm:$0xf]
    %v62 = vld [vmem:[%s5] sm:$0x1]
    %v64 = vlaneseq
    %v65 = vshrl.u32 %v64, 7
    %v66 = vsub.s32 0, %v65
    %v67 = vrot.slane %v62, %v66
    %vm69 = vcmask 64512
    %v71 = vsel %vm69, %v60, 0
    %vm73 = vcmask 1043456
    %v75 = vsel %vm73, %v61, 0
    %77 = vmatprep.subr.bf16.mxu0 0
    %78 = vmatpush1.bf16.msra.mxu0 %v75
    %79 = vmatprep.subr.bf16.mxu0 0
    %80 = vmatpush1.bf16.msra.mxu0 0
    %81 = vmatprep.subr.bf16.mxu0 0
    %82 = vmatpush1.bf16.msra.mxu0 0
    %83 = vmatprep.subr.bf16.mxu0 0
    %84 = vmatpush1.bf16.msra.mxu0 0
    %85 = vmatprep.subr.bf16.mxu0 0
    %86 = vmatpush1.bf16.msra.mxu0 0
    %87 = vmatprep.subr.bf16.mxu0 0
    %88 = vmatpush1.bf16.msra.mxu0 0
    %89 = vmatprep.subr.bf16.mxu0 0
    %90 = vmatpush1.bf16.msra.mxu0 0
    %91 = vmatprep.subr.bf16.mxu0 0
    %92 = vmatpush1.bf16.msra.mxu0 0
    %93 = vmatprep.subr.bf16.mxu0 0
    %94 = vmatpush1.bf16.msra.mxu0 0
    %95 = vmatprep.subr.bf16.mxu0 0
    %96 = vmatpush1.bf16.msra.mxu0 0
    %97 = vmatprep.subr.bf16.mxu0 0
    %98 = vmatpush1.bf16.msra.mxu0 0
    %99 = vmatprep.subr.bf16.mxu0 0
    %100 = vmatpush1.bf16.msra.mxu0 0
    %101 = vmatprep.subr.bf16.mxu0 0
    %102 = vmatpush1.bf16.msra.mxu0 0
    %103 = vmatprep.subr.bf16.mxu0 0
    %104 = vmatpush1.bf16.msra.mxu0 0
    %105 = vmatprep.subr.bf16.mxu0 0
    %106 = vmatpush1.bf16.msra.mxu0 0
    %107 = vmatprep.subr.bf16.mxu0 0
    %108 = vmatpush1.bf16.msra.mxu0 0
    %109 = vmatprep.mubr.bf16.mxu0 0
    %110 = vmatmul.mubr.bf16.gmra.mrb[0].mxu0 %v71
    %v111 = vpop.f32.mrb[0].mxu0
    %v112 = vadd.f32 %v67, %v111
    %v113 = vpop.f32.mrb[0].mxu0
    %v114 = vpop.f32.mrb[0].mxu0
    %v115 = vadd.f32 %v67, %v114
    %v116 = vpop.f32.mrb[0].mxu0
    %117 = vdwg.mxu0
    %v118 = vmax.f32 %v112, 0.0
    %v119 = vmax.f32 %v115, 0.0
    %v120 = vpack.c.bf16 %v119, %v118
    %v121 = vld [vmem:[%s6] sm:$0xff]
    %v122 = vld [vmem:[%s6 + $0x8] sm:$0xff]
    %v123 = vld [vmem:[%s6 + $0x10] sm:$0xff]
    %v124 = vld [vmem:[%s6 + $0x18] sm:$0xff]
    %v125 = vld [vmem:[%s6 + $0x20] sm:$0xff]
    %v126 = vld [vmem:[%s6 + $0x28] sm:$0xff]
    %v127 = vld [vmem:[%s6 + $0x30] sm:$0xff]
    %v128 = vld [vmem:[%s6 + $0x38] sm:$0xff]
    %v129 = vld [vmem:[%s6 + $0x40] sm:$0xff]
    %v130 = vld [vmem:[%s6 + $0x48] sm:$0xff]
    %v131 = vld [vmem:[%s6 + $0x50] sm:$0xff]
    %v132 = vld [vmem:[%s6 + $0x58] sm:$0xff]
    %v133 = vld [vmem:[%s6 + $0x60] sm:$0xff]
    %v134 = vld [vmem:[%s6 + $0x68] sm:$0xff]
    %v135 = vld [vmem:[%s6 + $0x70] sm:$0xff]
    %v136 = vld [vmem:[%s6 + $0x78] sm:$0xff]
    %v137 = vld [vmem:[%s7] sm:$0xff]
    %v139 = vlaneseq
    %v140 = vshrl.u32 %v139, 7
    %v141 = vsub.s32 0, %v140
    %v142 = vrot.slane %v137, %v141
    %v143 = vlaneseq
    %v144 = vshrl.u32 %v143, 7
    %v145 = vsub.s32 1, %v144
    %v146 = vrot.slane %v137, %v145
    %v147 = vlaneseq
    %v148 = vshrl.u32 %v147, 7
    %v149 = vsub.s32 2, %v148
    %v150 = vrot.slane %v137, %v149
    %v151 = vlaneseq
    %v152 = vshrl.u32 %v151, 7
    %v153 = vsub.s32 3, %v152
    %v154 = vrot.slane %v137, %v153
    %v155 = vlaneseq
    %v156 = vshrl.u32 %v155, 7
    %v157 = vsub.s32 4, %v156
    %v158 = vrot.slane %v137, %v157
    %v159 = vlaneseq
    %v160 = vshrl.u32 %v159, 7
    %v161 = vsub.s32 5, %v160
    %v162 = vrot.slane %v137, %v161
    %v163 = vlaneseq
    %v164 = vshrl.u32 %v163, 7
    %v165 = vsub.s32 6, %v164
    %v166 = vrot.slane %v137, %v165
    %v167 = vlaneseq
    %v168 = vshrl.u32 %v167, 7
    %v169 = vsub.s32 7, %v168
    %v170 = vrot.slane %v137, %v169
    %v195 = vunpack.c.l.b16 %v121
    %v196 = vunpack.c.h.b16 %v121
    %v197 = vunpack.c.l.b16 %v122
    %v198 = vunpack.c.h.b16 %v122
    %v199 = vunpack.c.l.b16 %v123
    %v200 = vunpack.c.h.b16 %v123
    %v201 = vunpack.c.l.b16 %v124
    %v202 = vunpack.c.h.b16 %v124
    %v203 = vunpack.c.l.b16 %v125
    %v204 = vunpack.c.h.b16 %v125
    %v205 = vunpack.c.l.b16 %v126
    %v206 = vunpack.c.h.b16 %v126
    %v207 = vunpack.c.l.b16 %v127
    %v208 = vunpack.c.h.b16 %v127
    %v209 = vunpack.c.l.b16 %v128
    %v210 = vunpack.c.h.b16 %v128
    %v211 = vunpack.c.l.b16 %v129
    %v212 = vunpack.c.h.b16 %v129
    %v213 = vunpack.c.l.b16 %v130
    %v214 = vunpack.c.h.b16 %v130
    %v215 = vunpack.c.l.b16 %v131
    %v216 = vunpack.c.h.b16 %v131
    %v217 = vunpack.c.l.b16 %v132
    %v218 = vunpack.c.h.b16 %v132
    %v219 = vunpack.c.l.b16 %v133
    %v220 = vunpack.c.h.b16 %v133
    %v221 = vunpack.c.l.b16 %v134
    %v222 = vunpack.c.h.b16 %v134
    %v223 = vunpack.c.l.b16 %v135
    %v224 = vunpack.c.h.b16 %v135
    %v225 = vunpack.c.l.b16 %v136
    %v226 = vunpack.c.h.b16 %v136
    %v227 = vpack.c.b16 %v203, %v195
    %v228 = vpack.c.b16 %v204, %v196
    %v229 = vpack.c.b16 %v205, %v197
    %v230 = vpack.c.b16 %v206, %v198
    %v231 = vpack.c.b16 %v207, %v199
    %v232 = vpack.c.b16 %v208, %v200
    %v233 = vpack.c.b16 %v209, %v201
    %v234 = vpack.c.b16 %v210, %v202
    %v235 = vpack.c.b16 %v219, %v211
    %v236 = vpack.c.b16 %v220, %v212
    %v237 = vpack.c.b16 %v221, %v213
    %v238 = vpack.c.b16 %v222, %v214
    %v239 = vpack.c.b16 %v223, %v215
    %v240 = vpack.c.b16 %v224, %v216
    %v241 = vpack.c.b16 %v225, %v217
    %v242 = vpack.c.b16 %v226, %v218
    %vm259 = vcmask 261120
    %v261 = vsel %vm259, %v120, 0
    %263 = vmatprep.subr.bf16.mxu0 %v228
    %264 = vmatpush1.bf16.msra.mxu0 %v227
    %265 = vmatprep.subr.bf16.mxu0 %v236
    %266 = vmatpush1.bf16.msra.mxu0 %v235
    %267 = vmatprep.subr.bf16.mxu0 0
    %268 = vmatpush1.bf16.msra.mxu0 0
    %269 = vmatprep.subr.bf16.mxu0 0
    %270 = vmatpush1.bf16.msra.mxu0 0
    %271 = vmatprep.subr.bf16.mxu0 0
    %272 = vmatpush1.bf16.msra.mxu0 0
    %273 = vmatprep.subr.bf16.mxu0 0
    %274 = vmatpush1.bf16.msra.mxu0 0
    %275 = vmatprep.subr.bf16.mxu0 0
    %276 = vmatpush1.bf16.msra.mxu0 0
    %277 = vmatprep.subr.bf16.mxu0 0
    %278 = vmatpush1.bf16.msra.mxu0 0
    %279 = vmatprep.subr.bf16.mxu0 0
    %280 = vmatpush1.bf16.msra.mxu0 0
    %281 = vmatprep.subr.bf16.mxu0 0
    %282 = vmatpush1.bf16.msra.mxu0 0
    %283 = vmatprep.subr.bf16.mxu0 0
    %284 = vmatpush1.bf16.msra.mxu0 0
    %285 = vmatprep.subr.bf16.mxu0 0
    %286 = vmatpush1.bf16.msra.mxu0 0
    %287 = vmatprep.subr.bf16.mxu0 0
    %288 = vmatpush1.bf16.msra.mxu0 0
    %289 = vmatprep.subr.bf16.mxu0 0
    %290 = vmatpush1.bf16.msra.mxu0 0
    %291 = vmatprep.subr.bf16.mxu0 0
    %292 = vmatpush1.bf16.msra.mxu0 0
    %293 = vmatprep.subr.bf16.mxu0 0
    %294 = vmatpush1.bf16.msra.mxu0 0
    %295 = vmatprep.mubr.bf16.mxu0 0
    %296 = vmatmul.mubr.bf16.gmra.mrb[0].mxu0 %v261
    %v297 = vpop.f32.mrb[0].mxu0
    %v298 = vadd.f32 %v142, %v297
    %v299 = vpop.f32.mrb[0].mxu0
    %v300 = vadd.f32 %v146, %v299
    %v301 = vpop.f32.mrb[0].mxu0
    %v302 = vadd.f32 %v142, %v301
    %v303 = vpop.f32.mrb[0].mxu0
    %v304 = vadd.f32 %v146, %v303
    %305 = vdwg.mxu0
    %306 = vmatprep.subr.bf16.mxu0 %v230
    %307 = vmatpush1.bf16.msra.mxu0 %v229
    %308 = vmatprep.subr.bf16.mxu0 %v238
    %309 = vmatpush1.bf16.msra.mxu0 %v237
    %310 = vmatprep.subr.bf16.mxu0 0
    %311 = vmatpush1.bf16.msra.mxu0 0
    %312 = vmatprep.subr.bf16.mxu0 0
    %313 = vmatpush1.bf16.msra.mxu0 0
    %314 = vmatprep.subr.bf16.mxu0 0
    %315 = vmatpush1.bf16.msra.mxu0 0
    %316 = vmatprep.subr.bf16.mxu0 0
    %317 = vmatpush1.bf16.msra.mxu0 0
    %318 = vmatprep.subr.bf16.mxu0 0
    %319 = vmatpush1.bf16.msra.mxu0 0
    %320 = vmatprep.subr.bf16.mxu0 0
    %321 = vmatpush1.bf16.msra.mxu0 0
    %322 = vmatprep.subr.bf16.mxu0 0
    %323 = vmatpush1.bf16.msra.mxu0 0
    %324 = vmatprep.subr.bf16.mxu0 0
    %325 = vmatpush1.bf16.msra.mxu0 0
    %326 = vmatprep.subr.bf16.mxu0 0
    %327 = vmatpush1.bf16.msra.mxu0 0
    %328 = vmatprep.subr.bf16.mxu0 0
    %329 = vmatpush1.bf16.msra.mxu0 0
    %330 = vmatprep.subr.bf16.mxu0 0
    %331 = vmatpush1.bf16.msra.mxu0 0
    %332 = vmatprep.subr.bf16.mxu0 0
    %333 = vmatpush1.bf16.msra.mxu0 0
    %334 = vmatprep.subr.bf16.mxu0 0
    %335 = vmatpush1.bf16.msra.mxu0 0
    %336 = vmatprep.subr.bf16.mxu0 0
    %337 = vmatpush1.bf16.msra.mxu0 0
    %338 = vmatprep.mubr.bf16.mxu0 0
    %339 = vmatmul.mubr.bf16.gmra.mrb[0].mxu0 %v261
    %v340 = vpop.f32.mrb[0].mxu0
    %v341 = vadd.f32 %v150, %v340
    %v342 = vpop.f32.mrb[0].mxu0
    %v343 = vadd.f32 %v154, %v342
    %v344 = vpop.f32.mrb[0].mxu0
    %v345 = vadd.f32 %v150, %v344
    %v346 = vpop.f32.mrb[0].mxu0
    %v347 = vadd.f32 %v154, %v346
    %348 = vdwg.mxu0
    %349 = vmatprep.subr.bf16.mxu0 %v232
    %350 = vmatpush1.bf16.msra.mxu0 %v231
    %351 = vmatprep.subr.bf16.mxu0 %v240
    %352 = vmatpush1.bf16.msra.mxu0 %v239
    %353 = vmatprep.subr.bf16.mxu0 0
    %354 = vmatpush1.bf16.msra.mxu0 0
    %355 = vmatprep.subr.bf16.mxu0 0
    %356 = vmatpush1.bf16.msra.mxu0 0
    %357 = vmatprep.subr.bf16.mxu0 0
    %358 = vmatpush1.bf16.msra.mxu0 0
    %359 = vmatprep.subr.bf16.mxu0 0
    %360 = vmatpush1.bf16.msra.mxu0 0
    %361 = vmatprep.subr.bf16.mxu0 0
    %362 = vmatpush1.bf16.msra.mxu0 0
    %363 = vmatprep.subr.bf16.mxu0 0
    %364 = vmatpush1.bf16.msra.mxu0 0
    %365 = vmatprep.subr.bf16.mxu0 0
    %366 = vmatpush1.bf16.msra.mxu0 0
    %367 = vmatprep.subr.bf16.mxu0 0
    %368 = vmatpush1.bf16.msra.mxu0 0
    %369 = vmatprep.subr.bf16.mxu0 0
    %370 = vmatpush1.bf16.msra.mxu0 0
    %371 = vmatprep.subr.bf16.mxu0 0
    %372 = vmatpush1.bf16.msra.mxu0 0
    %373 = vmatprep.subr.bf16.mxu0 0
    %374 = vmatpush1.bf16.msra.mxu0 0
    %375 = vmatprep.subr.bf16.mxu0 0
    %376 = vmatpush1.bf16.msra.mxu0 0
    %377 = vmatprep.subr.bf16.mxu0 0
    %378 = vmatpush1.bf16.msra.mxu0 0
    %379 = vmatprep.subr.bf16.mxu0 0
    %380 = vmatpush1.bf16.msra.mxu0 0
    %381 = vmatprep.mubr.bf16.mxu0 0
    %382 = vmatmul.mubr.bf16.gmra.mrb[0].mxu0 %v261
    %v383 = vpop.f32.mrb[0].mxu0
    %v384 = vadd.f32 %v158, %v383
    %v385 = vpop.f32.mrb[0].mxu0
    %v386 = vadd.f32 %v162, %v385
    %v387 = vpop.f32.mrb[0].mxu0
    %v388 = vadd.f32 %v158, %v387
    %v389 = vpop.f32.mrb[0].mxu0
    %v390 = vadd.f32 %v162, %v389
    %391 = vdwg.mxu0
    %392 = vmatprep.subr.bf16.mxu0 %v234
    %393 = vmatpush1.bf16.msra.mxu0 %v233
    %394 = vmatprep.subr.bf16.mxu0 %v242
    %395 = vmatpush1.bf16.msra.mxu0 %v241
    %396 = vmatprep.subr.bf16.mxu0 0
    %397 = vmatpush1.bf16.msra.mxu0 0
    %398 = vmatprep.subr.bf16.mxu0 0
    %399 = vmatpush1.bf16.msra.mxu0 0
    %400 = vmatprep.subr.bf16.mxu0 0
    %401 = vmatpush1.bf16.msra.mxu0 0
    %402 = vmatprep.subr.bf16.mxu0 0
    %403 = vmatpush1.bf16.msra.mxu0 0
    %404 = vmatprep.subr.bf16.mxu0 0
    %405 = vmatpush1.bf16.msra.mxu0 0
    %406 = vmatprep.subr.bf16.mxu0 0
    %407 = vmatpush1.bf16.msra.mxu0 0
    %408 = vmatprep.subr.bf16.mxu0 0
    %409 = vmatpush1.bf16.msra.mxu0 0
    %410 = vmatprep.subr.bf16.mxu0 0
    %411 = vmatpush1.bf16.msra.mxu0 0
    %412 = vmatprep.subr.bf16.mxu0 0
    %413 = vmatpush1.bf16.msra.mxu0 0
    %414 = vmatprep.subr.bf16.mxu0 0
    %415 = vmatpush1.bf16.msra.mxu0 0
    %416 = vmatprep.subr.bf16.mxu0 0
    %417 = vmatpush1.bf16.msra.mxu0 0
    %418 = vmatprep.subr.bf16.mxu0 0
    %419 = vmatpush1.bf16.msra.mxu0 0
    %420 = vmatprep.subr.bf16.mxu0 0
    %421 = vmatpush1.bf16.msra.mxu0 0
    %422 = vmatprep.subr.bf16.mxu0 0
    %423 = vmatpush1.bf16.msra.mxu0 0
    %424 = vmatprep.mubr.bf16.mxu0 0
    %425 = vmatmul.mubr.bf16.gmra.mrb[0].mxu0 %v261
    %v426 = vpop.f32.mrb[0].mxu0
    %v427 = vadd.f32 %v166, %v426
    %v428 = vpop.f32.mrb[0].mxu0
    %v429 = vadd.f32 %v170, %v428
    %v430 = vpop.f32.mrb[0].mxu0
    %v431 = vadd.f32 %v166, %v430
    %v432 = vpop.f32.mrb[0].mxu0
    %v433 = vadd.f32 %v170, %v432
    %434 = vdwg.mxu0
    %v435 = vld [vmem:[%s0] sm:$0xff]
    %v436 = vld [vmem:[%s0 + $0x8] sm:$0xff]
    %v437 = vpack.c.bf16 %v436, %v435
    %v438 = vld [vmem:[%s2] sm:$0xf]
    %v439 = vld [vmem:[%s2 + $0x4] sm:$0xf]
    %v440 = vld [vmem:[%s3] sm:$0x1]
    %v442 = vlaneseq
    %v443 = vshrl.u32 %v442, 7
    %v444 = vsub.s32 0, %v443
    %v445 = vrot.slane %v440, %v444
    %v449 = vunpack.c.l.b16 %v438
    %v450 = vunpack.c.l.b16 %v439
    %v451 = vpack.c.b16 %v450, %v449
    %vm453 = vcmask 130048
    %v455 = vsel %vm453, %v437, 0
    %457 = vmatprep.subr.bf16.mxu0 0
    %458 = vmatpush1.bf16.msra.mxu0 %v451
    %459 = vmatprep.subr.bf16.mxu0 0
    %460 = vmatpush1.bf16.msra.mxu0 0
    %461 = vmatprep.subr.bf16.mxu0 0
    %462 = vmatpush1.bf16.msra.mxu0 0
    %463 = vmatprep.subr.bf16.mxu0 0
    %464 = vmatpush1.bf16.msra.mxu0 0
    %465 = vmatprep.subr.bf16.mxu0 0
    %466 = vmatpush1.bf16.msra.mxu0 0
    %467 = vmatprep.subr.bf16.mxu0 0
    %468 = vmatpush1.bf16.msra.mxu0 0
    %469 = vmatprep.subr.bf16.mxu0 0
    %470 = vmatpush1.bf16.msra.mxu0 0
    %471 = vmatprep.subr.bf16.mxu0 0
    %472 = vmatpush1.bf16.msra.mxu0 0
    %473 = vmatprep.subr.bf16.mxu0 0
    %474 = vmatpush1.bf16.msra.mxu0 0
    %475 = vmatprep.subr.bf16.mxu0 0
    %476 = vmatpush1.bf16.msra.mxu0 0
    %477 = vmatprep.subr.bf16.mxu0 0
    %478 = vmatpush1.bf16.msra.mxu0 0
    %479 = vmatprep.subr.bf16.mxu0 0
    %480 = vmatpush1.bf16.msra.mxu0 0
    %481 = vmatprep.subr.bf16.mxu0 0
    %482 = vmatpush1.bf16.msra.mxu0 0
    %483 = vmatprep.subr.bf16.mxu0 0
    %484 = vmatpush1.bf16.msra.mxu0 0
    %485 = vmatprep.subr.bf16.mxu0 0
    %486 = vmatpush1.bf16.msra.mxu0 0
    %487 = vmatprep.subr.bf16.mxu0 0
    %488 = vmatpush1.bf16.msra.mxu0 0
    %489 = vmatprep.mubr.bf16.mxu0 0
    %490 = vmatmul.mubr.bf16.gmra.mrb[0].mxu0 %v455
    %v491 = vpop.f32.mrb[0].mxu0
    %v492 = vadd.f32 %v445, %v491
    %v493 = vpop.f32.mrb[0].mxu0
    %v494 = vpop.f32.mrb[0].mxu0
    %v495 = vadd.f32 %v445, %v494
    %v496 = vpop.f32.mrb[0].mxu0
    %497 = vdwg.mxu0
    %v498 = vmax.f32 %v492, 0.0
    %v499 = vmax.f32 %v495, 0.0
    %v500 = vld [vmem:[%s10] sm:$0xf]
    %v501 = vld [vmem:[%s10 + $0x4] sm:$0xf]
    %v502 = vld [vmem:[%s11] sm:$0xf]
    %v503 = vld [vmem:[%s11 + $0x4] sm:$0xf]
    %v504 = vld [vmem:[%s8] sm:$0xff]
    %v505 = vld [vmem:[%s8 + $0x8] sm:$0xff]
    %v506 = vld [vmem:[%s8 + $0x10] sm:$0xff]
    %v507 = vld [vmem:[%s8 + $0x18] sm:$0xff]
    %v508 = vld [vmem:[%s8 + $0x20] sm:$0xff]
    %v509 = vld [vmem:[%s8 + $0x28] sm:$0xff]
    %v510 = vld [vmem:[%s8 + $0x30] sm:$0xff]
    %v511 = vld [vmem:[%s8 + $0x38] sm:$0xff]
    %v512 = vld [vmem:[%s8 + $0x40] sm:$0xff]
    %v513 = vld [vmem:[%s8 + $0x48] sm:$0xff]
    %v514 = vld [vmem:[%s8 + $0x50] sm:$0xff]
    %v515 = vld [vmem:[%s8 + $0x58] sm:$0xff]
    %v516 = vld [vmem:[%s8 + $0x60] sm:$0xff]
    %v517 = vld [vmem:[%s8 + $0x68] sm:$0xff]
    %v518 = vld [vmem:[%s8 + $0x70] sm:$0xff]
    %v519 = vld [vmem:[%s8 + $0x78] sm:$0xff]
    %v520 = vld [vmem:[%s9] sm:$0xf]
    %v521 = vld [vmem:[%s9 + $0x4] sm:$0xf]
    %v522 = vld [vmem:[%s9 + $0x8] sm:$0xf]
    %v523 = vld [vmem:[%s9 + $0xc] sm:$0xf]
    %v524 = vld [vmem:[%s9 + $0x10] sm:$0xf]
    %v525 = vld [vmem:[%s9 + $0x14] sm:$0xf]
    %v526 = vld [vmem:[%s9 + $0x18] sm:$0xf]
    %v527 = vld [vmem:[%s9 + $0x1c] sm:$0xf]
    %v528 = vld [vmem:[%s9 + $0x20] sm:$0xf]
    %v529 = vld [vmem:[%s9 + $0x24] sm:$0xf]
    %v530 = vld [vmem:[%s9 + $0x28] sm:$0xf]
    %v531 = vld [vmem:[%s9 + $0x2c] sm:$0xf]
    %v532 = vld [vmem:[%s9 + $0x30] sm:$0xf]
    %v533 = vld [vmem:[%s9 + $0x34] sm:$0xf]
    %v534 = vld [vmem:[%s9 + $0x38] sm:$0xf]
    %v535 = vld [vmem:[%s9 + $0x3c] sm:$0xf]
    %v536 = vld [vmem:[%s9 + $0x40] sm:$0xf]
    %v537 = vld [vmem:[%s9 + $0x44] sm:$0xf]
    %v538 = vld [vmem:[%s9 + $0x48] sm:$0xf]
    %v539 = vld [vmem:[%s9 + $0x4c] sm:$0xf]
    %v540 = vld [vmem:[%s9 + $0x50] sm:$0xf]
    %v541 = vld [vmem:[%s9 + $0x54] sm:$0xf]
    %v542 = vld [vmem:[%s9 + $0x58] sm:$0xf]
    %v543 = vld [vmem:[%s9 + $0x5c] sm:$0xf]
    %v544 = vld [vmem:[%s9 + $0x60] sm:$0xf]
    %v545 = vld [vmem:[%s9 + $0x64] sm:$0xf]
    %v546 = vld [vmem:[%s9 + $0x68] sm:$0xf]
    %v547 = vld [vmem:[%s9 + $0x6c] sm:$0xf]
    %v548 = vld [vmem:[%s9 + $0x70] sm:$0xf]
    %v549 = vld [vmem:[%s9 + $0x74] sm:$0xf]
    %v550 = vld [vmem:[%s9 + $0x78] sm:$0xf]
    %v551 = vld [vmem:[%s9 + $0x7c] sm:$0xf]
    %v552 = vld [vmem:[%s9 + $0x80] sm:$0xf]
    %v553 = vld [vmem:[%s9 + $0x84] sm:$0xf]
    %v554 = vld [vmem:[%s9 + $0x88] sm:$0xf]
    %v555 = vld [vmem:[%s9 + $0x8c] sm:$0xf]
    %v556 = vld [vmem:[%s9 + $0x90] sm:$0xf]
    %v557 = vld [vmem:[%s9 + $0x94] sm:$0xf]
    %v558 = vld [vmem:[%s9 + $0x98] sm:$0xf]
    %v559 = vld [vmem:[%s9 + $0x9c] sm:$0xf]
    %v560 = vld [vmem:[%s9 + $0xa0] sm:$0xf]
    %v561 = vld [vmem:[%s9 + $0xa4] sm:$0xf]
    %v562 = vld [vmem:[%s9 + $0xa8] sm:$0xf]
    %v563 = vld [vmem:[%s9 + $0xac] sm:$0xf]
    %v564 = vld [vmem:[%s9 + $0xb0] sm:$0xf]
    %v565 = vld [vmem:[%s9 + $0xb4] sm:$0xf]
    %v566 = vld [vmem:[%s9 + $0xb8] sm:$0xf]
    %v567 = vld [vmem:[%s9 + $0xbc] sm:$0xf]
    %v568 = vld [vmem:[%s9 + $0xc0] sm:$0xf]
    %v569 = vld [vmem:[%s9 + $0xc4] sm:$0xf]
    %v570 = vld [vmem:[%s9 + $0xc8] sm:$0xf]
    %v571 = vld [vmem:[%s9 + $0xcc] sm:$0xf]
    %v572 = vld [vmem:[%s9 + $0xd0] sm:$0xf]
    %v573 = vld [vmem:[%s9 + $0xd4] sm:$0xf]
    %v574 = vld [vmem:[%s9 + $0xd8] sm:$0xf]
    %v575 = vld [vmem:[%s9 + $0xdc] sm:$0xf]
    %v576 = vld [vmem:[%s9 + $0xe0] sm:$0xf]
    %v577 = vld [vmem:[%s9 + $0xe4] sm:$0xf]
    %v578 = vld [vmem:[%s9 + $0xe8] sm:$0xf]
    %v579 = vld [vmem:[%s9 + $0xec] sm:$0xf]
    %v580 = vld [vmem:[%s9 + $0xf0] sm:$0xf]
    %v581 = vld [vmem:[%s9 + $0xf4] sm:$0xf]
    %v582 = vld [vmem:[%s9 + $0xf8] sm:$0xf]
    %v583 = vld [vmem:[%s9 + $0xfc] sm:$0xf]
    %v584 = vld [vmem:[%s9 + $0x100] sm:$0xf]
    %v585 = vld [vmem:[%s9 + $0x104] sm:$0xf]
    %v586 = vld [vmem:[%s9 + $0x108] sm:$0xf]
    %v587 = vld [vmem:[%s9 + $0x10c] sm:$0xf]
    %v588 = vld [vmem:[%s9 + $0x110] sm:$0xf]
    %v589 = vld [vmem:[%s9 + $0x114] sm:$0xf]
    %v590 = vld [vmem:[%s9 + $0x118] sm:$0xf]
    %v591 = vld [vmem:[%s9 + $0x11c] sm:$0xf]
    %v592 = vld [vmem:[%s9 + $0x120] sm:$0xf]
    %v593 = vld [vmem:[%s9 + $0x124] sm:$0xf]
    %v594 = vld [vmem:[%s9 + $0x128] sm:$0xf]
    %v595 = vld [vmem:[%s9 + $0x12c] sm:$0xf]
    %v596 = vld [vmem:[%s9 + $0x130] sm:$0xf]
    %v597 = vld [vmem:[%s9 + $0x134] sm:$0xf]
    %v598 = vld [vmem:[%s9 + $0x138] sm:$0xf]
    %v599 = vld [vmem:[%s9 + $0x13c] sm:$0xf]
    %v600 = vld [vmem:[%s9 + $0x140] sm:$0xf]
    %v601 = vld [vmem:[%s9 + $0x144] sm:$0xf]
    %v602 = vld [vmem:[%s9 + $0x148] sm:$0xf]
    %v603 = vld [vmem:[%s9 + $0x14c] sm:$0xf]
    %v604 = vld [vmem:[%s9 + $0x150] sm:$0xf]
    %v605 = vld [vmem:[%s9 + $0x154] sm:$0xf]
    %v606 = vld [vmem:[%s9 + $0x158] sm:$0xf]
    %v607 = vld [vmem:[%s9 + $0x15c] sm:$0xf]
    %v608 = vld [vmem:[%s9 + $0x160] sm:$0xf]
    %v609 = vld [vmem:[%s9 + $0x164] sm:$0xf]
    %v610 = vld [vmem:[%s9 + $0x168] sm:$0xf]
    %v611 = vld [vmem:[%s9 + $0x16c] sm:$0xf]
    %v612 = vld [vmem:[%s9 + $0x170] sm:$0xf]
    %v613 = vld [vmem:[%s9 + $0x174] sm:$0xf]
    %v614 = vld [vmem:[%s9 + $0x178] sm:$0xf]
    %v615 = vld [vmem:[%s9 + $0x17c] sm:$0xf]
    %v616 = vld [vmem:[%s9 + $0x180] sm:$0xf]
    %v617 = vld [vmem:[%s9 + $0x184] sm:$0xf]
    %v618 = vld [vmem:[%s9 + $0x188] sm:$0xf]
    %v619 = vld [vmem:[%s9 + $0x18c] sm:$0xf]
    %v620 = vld [vmem:[%s9 + $0x190] sm:$0xf]
    %v621 = vld [vmem:[%s9 + $0x194] sm:$0xf]
    %v622 = vld [vmem:[%s9 + $0x198] sm:$0xf]
    %v623 = vld [vmem:[%s9 + $0x19c] sm:$0xf]
    %v624 = vld [vmem:[%s9 + $0x1a0] sm:$0xf]
    %v625 = vld [vmem:[%s9 + $0x1a4] sm:$0xf]
    %v626 = vld [vmem:[%s9 + $0x1a8] sm:$0xf]
    %v627 = vld [vmem:[%s9 + $0x1ac] sm:$0xf]
    %v628 = vld [vmem:[%s9 + $0x1b0] sm:$0xf]
    %v629 = vld [vmem:[%s9 + $0x1b4] sm:$0xf]
    %v630 = vld [vmem:[%s9 + $0x1b8] sm:$0xf]
    %v631 = vld [vmem:[%s9 + $0x1bc] sm:$0xf]
    %v632 = vld [vmem:[%s9 + $0x1c0] sm:$0xf]
    %v633 = vld [vmem:[%s9 + $0x1c4] sm:$0xf]
    %v634 = vld [vmem:[%s9 + $0x1c8] sm:$0xf]
    %v635 = vld [vmem:[%s9 + $0x1cc] sm:$0xf]
    %v636 = vld [vmem:[%s9 + $0x1d0] sm:$0xf]
    %v637 = vld [vmem:[%s9 + $0x1d4] sm:$0xf]
    %v638 = vld [vmem:[%s9 + $0x1d8] sm:$0xf]
    %v639 = vld [vmem:[%s9 + $0x1dc] sm:$0xf]
    %v640 = vld [vmem:[%s9 + $0x1e0] sm:$0xf]
    %v641 = vld [vmem:[%s9 + $0x1e4] sm:$0xf]
    %v642 = vld [vmem:[%s9 + $0x1e8] sm:$0xf]
    %v643 = vld [vmem:[%s9 + $0x1ec] sm:$0xf]
    %v644 = vld [vmem:[%s9 + $0x1f0] sm:$0xf]
    %v645 = vld [vmem:[%s9 + $0x1f4] sm:$0xf]
    %v646 = vld [vmem:[%s9 + $0x1f8] sm:$0xf]
    %v647 = vld [vmem:[%s9 + $0x1fc] sm:$0xf]
    %v648 = vpack.c.bf16 %v499, %v498
    %v651 = vunpack.c.l.b16 %v500
    %v652 = vunpack.c.l.b16 %v501
    %v653 = vpack.c.b16 %v652, %v651
    %v655 = vsel %vm453, %v653, 0
    %657 = vmatprep.subr.bf16.mxu0 0
    %658 = vmatpush1.bf16.msra.mxu0 %v648
    %659 = vmatprep.subr.bf16.mxu0 0
    %660 = vmatpush1.bf16.msra.mxu0 0
    %661 = vmatprep.subr.bf16.mxu0 0
    %662 = vmatpush1.bf16.msra.mxu0 0
    %663 = vmatprep.subr.bf16.mxu0 0
    %664 = vmatpush1.bf16.msra.mxu0 0
    %665 = vmatprep.subr.bf16.mxu0 0
    %666 = vmatpush1.bf16.msra.mxu0 0
    %667 = vmatprep.subr.bf16.mxu0 0
    %668 = vmatpush1.bf16.msra.mxu0 0
    %669 = vmatprep.subr.bf16.mxu0 0
    %670 = vmatpush1.bf16.msra.mxu0 0
    %671 = vmatprep.subr.bf16.mxu0 0
    %672 = vmatpush1.bf16.msra.mxu0 0
    %673 = vmatprep.subr.bf16.mxu0 0
    %674 = vmatpush1.bf16.msra.mxu0 0
    %675 = vmatprep.subr.bf16.mxu0 0
    %676 = vmatpush1.bf16.msra.mxu0 0
    %677 = vmatprep.subr.bf16.mxu0 0
    %678 = vmatpush1.bf16.msra.mxu0 0
    %679 = vmatprep.subr.bf16.mxu0 0
    %680 = vmatpush1.bf16.msra.mxu0 0
    %681 = vmatprep.subr.bf16.mxu0 0
    %682 = vmatpush1.bf16.msra.mxu0 0
    %683 = vmatprep.subr.bf16.mxu0 0
    %684 = vmatpush1.bf16.msra.mxu0 0
    %685 = vmatprep.subr.bf16.mxu0 0
    %686 = vmatpush1.bf16.msra.mxu0 0
    %687 = vmatprep.subr.bf16.mxu0 0
    %688 = vmatpush1.bf16.msra.mxu0 0
    %689 = vmatprep.mubr.bf16.mxu0 0
    %690 = vmatmul.mubr.bf16.gmra.mrb[0].mxu0 %v655
    %v691 = vpop.f32.mrb[0].mxu0
    %v692 = vadd.f32 0.0, %v691
    %v693 = vpop.f32.mrb[0].mxu0
    %v694 = vpop.f32.mrb[0].mxu0
    %v695 = vadd.f32 0.0, %v694
    %v696 = vpop.f32.mrb[0].mxu0
    %697 = vdwg.mxu0
    %v698 = vpack.c.bf16 %v695, %v692
    %v715 = vunpack.c.l.b16 %v504
    %v716 = vunpack.c.h.b16 %v504
    %v717 = vunpack.c.l.b16 %v505
    %v718 = vunpack.c.h.b16 %v505
    %v719 = vunpack.c.l.b16 %v506
    %v720 = vunpack.c.h.b16 %v506
    %v721 = vunpack.c.l.b16 %v507
    %v722 = vunpack.c.h.b16 %v507
    %v723 = vunpack.c.l.b16 %v508
    %v724 = vunpack.c.h.b16 %v508
    %v725 = vunpack.c.l.b16 %v509
    %v726 = vunpack.c.h.b16 %v509
    %v727 = vunpack.c.l.b16 %v510
    %v728 = vunpack.c.h.b16 %v510
    %v729 = vunpack.c.l.b16 %v511
    %v730 = vunpack.c.h.b16 %v511
    %v731 = vunpack.c.l.b16 %v512
    %v732 = vunpack.c.h.b16 %v512
    %v733 = vunpack.c.l.b16 %v513
    %v734 = vunpack.c.h.b16 %v513
    %v735 = vunpack.c.l.b16 %v514
    %v736 = vunpack.c.h.b16 %v514
    %v737 = vunpack.c.l.b16 %v515
    %v738 = vunpack.c.h.b16 %v515
    %v739 = vunpack.c.l.b16 %v516
    %v740 = vunpack.c.h.b16 %v516
    %v741 = vunpack.c.l.b16 %v517
    %v742 = vunpack.c.h.b16 %v517
    %v743 = vunpack.c.l.b16 %v518
    %v744 = vunpack.c.h.b16 %v518
    %v745 = vunpack.c.l.b16 %v519
    %v746 = vunpack.c.h.b16 %v519
    %v747 = vpack.c.b16 %v723, %v715
    %v748 = vpack.c.b16 %v724, %v716
    %v749 = vpack.c.b16 %v725, %v717
    %v750 = vpack.c.b16 %v726, %v718
    %v751 = vpack.c.b16 %v727, %v719
    %v752 = vpack.c.b16 %v728, %v720
    %v753 = vpack.c.b16 %v729, %v721
    %v754 = vpack.c.b16 %v730, %v722
    %v755 = vpack.c.b16 %v739, %v731
    %v756 = vpack.c.b16 %v740, %v732
    %v757 = vpack.c.b16 %v741, %v733
    %v758 = vpack.c.b16 %v742, %v734
    %v759 = vpack.c.b16 %v743, %v735
    %v760 = vpack.c.b16 %v744, %v736
    %v761 = vpack.c.b16 %v745, %v737
    %v762 = vpack.c.b16 %v746, %v738
    %v780 = vsel %vm259, %v698, 0
    %782 = vmatprep.subr.bf16.mxu0 %v748
    %783 = vmatpush1.bf16.msra.mxu0 %v747
    %784 = vmatprep.subr.bf16.mxu0 %v756
    %785 = vmatpush1.bf16.msra.mxu0 %v755
    %786 = vmatprep.subr.bf16.mxu0 0
    %787 = vmatpush1.bf16.msra.mxu0 0
    %788 = vmatprep.subr.bf16.mxu0 0
    %789 = vmatpush1.bf16.msra.mxu0 0
    %790 = vmatprep.subr.bf16.mxu0 0
    %791 = vmatpush1.bf16.msra.mxu0 0
    %792 = vmatprep.subr.bf16.mxu0 0
    %793 = vmatpush1.bf16.msra.mxu0 0
    %794 = vmatprep.subr.bf16.mxu0 0
    %795 = vmatpush1.bf16.msra.mxu0 0
    %796 = vmatprep.subr.bf16.mxu0 0
    %797 = vmatpush1.bf16.msra.mxu0 0
    %798 = vmatprep.subr.bf16.mxu0 0
    %799 = vmatpush1.bf16.msra.mxu0 0
    %800 = vmatprep.subr.bf16.mxu0 0
    %801 = vmatpush1.bf16.msra.mxu0 0
    %802 = vmatprep.subr.bf16.mxu0 0
    %803 = vmatpush1.bf16.msra.mxu0 0
    %804 = vmatprep.subr.bf16.mxu0 0
    %805 = vmatpush1.bf16.msra.mxu0 0
    %806 = vmatprep.subr.bf16.mxu0 0
    %807 = vmatpush1.bf16.msra.mxu0 0
    %808 = vmatprep.subr.bf16.mxu0 0
    %809 = vmatpush1.bf16.msra.mxu0 0
    %810 = vmatprep.subr.bf16.mxu0 0
    %811 = vmatpush1.bf16.msra.mxu0 0
    %812 = vmatprep.subr.bf16.mxu0 0
    %813 = vmatpush1.bf16.msra.mxu0 0
    %814 = vmatprep.mubr.bf16.mxu0 0
    %815 = vmatmul.mubr.bf16.gmra.mrb[0].mxu0 %v780
    %v816 = vpop.f32.mrb[0].mxu0
    %v817 = vadd.f32 0.0, %v816
    %v818 = vpop.f32.mrb[0].mxu0
    %v819 = vadd.f32 0.0, %v818
    %v820 = vpop.f32.mrb[0].mxu0
    %v821 = vadd.f32 0.0, %v820
    %v822 = vpop.f32.mrb[0].mxu0
    %v823 = vadd.f32 0.0, %v822
    %824 = vdwg.mxu0
    %825 = vmatprep.subr.bf16.mxu0 %v750
    %826 = vmatpush1.bf16.msra.mxu0 %v749
    %827 = vmatprep.subr.bf16.mxu0 %v758
    %828 = vmatpush1.bf16.msra.mxu0 %v757
    %829 = vmatprep.subr.bf16.mxu0 0
    %830 = vmatpush1.bf16.msra.mxu0 0
    %831 = vmatprep.subr.bf16.mxu0 0
    %832 = vmatpush1.bf16.msra.mxu0 0
    %833 = vmatprep.subr.bf16.mxu0 0
    %834 = vmatpush1.bf16.msra.mxu0 0
    %835 = vmatprep.subr.bf16.mxu0 0
    %836 = vmatpush1.bf16.msra.mxu0 0
    %837 = vmatprep.subr.bf16.mxu0 0
    %838 = vmatpush1.bf16.msra.mxu0 0
    %839 = vmatprep.subr.bf16.mxu0 0
    %840 = vmatpush1.bf16.msra.mxu0 0
    %841 = vmatprep.subr.bf16.mxu0 0
    %842 = vmatpush1.bf16.msra.mxu0 0
    %843 = vmatprep.subr.bf16.mxu0 0
    %844 = vmatpush1.bf16.msra.mxu0 0
    %845 = vmatprep.subr.bf16.mxu0 0
    %846 = vmatpush1.bf16.msra.mxu0 0
    %847 = vmatprep.subr.bf16.mxu0 0
    %848 = vmatpush1.bf16.msra.mxu0 0
    %849 = vmatprep.subr.bf16.mxu0 0
    %850 = vmatpush1.bf16.msra.mxu0 0
    %851 = vmatprep.subr.bf16.mxu0 0
    %852 = vmatpush1.bf16.msra.mxu0 0
    %853 = vmatprep.subr.bf16.mxu0 0
    %854 = vmatpush1.bf16.msra.mxu0 0
    %855 = vmatprep.subr.bf16.mxu0 0
    %856 = vmatpush1.bf16.msra.mxu0 0
    %857 = vmatprep.mubr.bf16.mxu0 0
    %858 = vmatmul.mubr.bf16.gmra.mrb[0].mxu0 %v780
    %v859 = vpop.f32.mrb[0].mxu0
    %v860 = vadd.f32 0.0, %v859
    %v861 = vpop.f32.mrb[0].mxu0
    %v862 = vadd.f32 0.0, %v861
    %v863 = vpop.f32.mrb[0].mxu0
    %v864 = vadd.f32 0.0, %v863
    %v865 = vpop.f32.mrb[0].mxu0
    %v866 = vadd.f32 0.0, %v865
    %867 = vdwg.mxu0
    %868 = vmatprep.subr.bf16.mxu0 %v752
    %869 = vmatpush1.bf16.msra.mxu0 %v751
    %870 = vmatprep.subr.bf16.mxu0 %v760
    %871 = vmatpush1.bf16.msra.mxu0 %v759
    %872 = vmatprep.subr.bf16.mxu0 0
    %873 = vmatpush1.bf16.msra.mxu0 0
    %874 = vmatprep.subr.bf16.mxu0 0
    %875 = vmatpush1.bf16.msra.mxu0 0
    %876 = vmatprep.subr.bf16.mxu0 0
    %877 = vmatpush1.bf16.msra.mxu0 0
    %878 = vmatprep.subr.bf16.mxu0 0
    %879 = vmatpush1.bf16.msra.mxu0 0
    %880 = vmatprep.subr.bf16.mxu0 0
    %881 = vmatpush1.bf16.msra.mxu0 0
    %882 = vmatprep.subr.bf16.mxu0 0
    %883 = vmatpush1.bf16.msra.mxu0 0
    %884 = vmatprep.subr.bf16.mxu0 0
    %885 = vmatpush1.bf16.msra.mxu0 0
    %886 = vmatprep.subr.bf16.mxu0 0
    %887 = vmatpush1.bf16.msra.mxu0 0
    %888 = vmatprep.subr.bf16.mxu0 0
    %889 = vmatpush1.bf16.msra.mxu0 0
    %890 = vmatprep.subr.bf16.mxu0 0
    %891 = vmatpush1.bf16.msra.mxu0 0
    %892 = vmatprep.subr.bf16.mxu0 0
    %893 = vmatpush1.bf16.msra.mxu0 0
    %894 = vmatprep.subr.bf16.mxu0 0
    %895 = vmatpush1.bf16.msra.mxu0 0
    %896 = vmatprep.subr.bf16.mxu0 0
    %897 = vmatpush1.bf16.msra.mxu0 0
    %898 = vmatprep.subr.bf16.mxu0 0
    %899 = vmatpush1.bf16.msra.mxu0 0
    %900 = vmatprep.mubr.bf16.mxu0 0
    %901 = vmatmul.mubr.bf16.gmra.mrb[0].mxu0 %v780
    %v902 = vpop.f32.mrb[0].mxu0
    %v903 = vadd.f32 0.0, %v902
    %v904 = vpop.f32.mrb[0].mxu0
    %v905 = vadd.f32 0.0, %v904
    %v906 = vpop.f32.mrb[0].mxu0
    %v907 = vadd.f32 0.0, %v906
    %v908 = vpop.f32.mrb[0].mxu0
    %v909 = vadd.f32 0.0, %v908
    %910 = vdwg.mxu0
    %911 = vmatprep.subr.bf16.mxu0 %v754
    %912 = vmatpush1.bf16.msra.mxu0 %v753
    %913 = vmatprep.subr.bf16.mxu0 %v762
    %914 = vmatpush1.bf16.msra.mxu0 %v761
    %915 = vmatprep.subr.bf16.mxu0 0
    %916 = vmatpush1.bf16.msra.mxu0 0
    %917 = vmatprep.subr.bf16.mxu0 0
    %918 = vmatpush1.bf16.msra.mxu0 0
    %919 = vmatprep.subr.bf16.mxu0 0
    %920 = vmatpush1.bf16.msra.mxu0 0
    %921 = vmatprep.subr.bf16.mxu0 0
    %922 = vmatpush1.bf16.msra.mxu0 0
    %923 = vmatprep.subr.bf16.mxu0 0
    %924 = vmatpush1.bf16.msra.mxu0 0
    %925 = vmatprep.subr.bf16.mxu0 0
    %926 = vmatpush1.bf16.msra.mxu0 0
    %927 = vmatprep.subr.bf16.mxu0 0
    %928 = vmatpush1.bf16.msra.mxu0 0
    %929 = vmatprep.subr.bf16.mxu0 0
    %930 = vmatpush1.bf16.msra.mxu0 0
    %931 = vmatprep.subr.bf16.mxu0 0
    %932 = vmatpush1.bf16.msra.mxu0 0
    %933 = vmatprep.subr.bf16.mxu0 0
    %934 = vmatpush1.bf16.msra.mxu0 0
    %935 = vmatprep.subr.bf16.mxu0 0
    %936 = vmatpush1.bf16.msra.mxu0 0
    %937 = vmatprep.subr.bf16.mxu0 0
    %938 = vmatpush1.bf16.msra.mxu0 0
    %939 = vmatprep.subr.bf16.mxu0 0
    %940 = vmatpush1.bf16.msra.mxu0 0
    %941 = vmatprep.subr.bf16.mxu0 0
    %942 = vmatpush1.bf16.msra.mxu0 0
    %943 = vmatprep.mubr.bf16.mxu0 0
    %944 = vmatmul.mubr.bf16.gmra.mrb[0].mxu0 %v780
    %v945 = vpop.f32.mrb[0].mxu0
    %v946 = vadd.f32 0.0, %v945
    %v947 = vpop.f32.mrb[0].mxu0
    %v948 = vadd.f32 0.0, %v947
    %v949 = vpop.f32.mrb[0].mxu0
    %v950 = vadd.f32 0.0, %v949
    %v951 = vpop.f32.mrb[0].mxu0
    %v952 = vadd.f32 0.0, %v951
    %953 = vdwg.mxu0
    %v954 = vmul.f32 %v817, %v298
    %v955 = vmul.f32 %v819, %v300
    %v956 = vmul.f32 %v860, %v341
    %v957 = vmul.f32 %v862, %v343
    %v958 = vmul.f32 %v903, %v384
    %v959 = vmul.f32 %v905, %v386
    %v960 = vmul.f32 %v946, %v427
    %v961 = vmul.f32 %v948, %v429
    %v962 = vmul.f32 %v821, %v302
    %v963 = vmul.f32 %v823, %v304
    %v964 = vmul.f32 %v864, %v345
    %v965 = vmul.f32 %v866, %v347
    %v966 = vmul.f32 %v907, %v388
    %v967 = vmul.f32 %v909, %v390
    %v968 = vmul.f32 %v950, %v431
    %v969 = vmul.f32 %v952, %v433
    %v970 = vpack.c.bf16 %v962, %v954
    %v971 = vpack.c.bf16 %v963, %v955
    %v972 = vpack.c.bf16 %v964, %v956
    %v973 = vpack.c.bf16 %v965, %v957
    %v974 = vpack.c.bf16 %v966, %v958
    %v975 = vpack.c.bf16 %v967, %v959
    %v976 = vpack.c.bf16 %v968, %v960
    %v977 = vpack.c.bf16 %v969, %v961
    %v1106 = vunpack.c.l.b16 %v520
    %v1107 = vunpack.c.l.b16 %v521
    %v1108 = vunpack.c.l.b16 %v522
    %v1109 = vunpack.c.l.b16 %v523
    %v1110 = vunpack.c.l.b16 %v524
    %v1111 = vunpack.c.l.b16 %v525
    %v1112 = vunpack.c.l.b16 %v526
    %v1113 = vunpack.c.l.b16 %v527
    %v1114 = vunpack.c.l.b16 %v528
    %v1115 = vunpack.c.l.b16 %v529
    %v1116 = vunpack.c.l.b16 %v530
    %v1117 = vunpack.c.l.b16 %v531
    %v1118 = vunpack.c.l.b16 %v532
    %v1119 = vunpack.c.l.b16 %v533
    %v1120 = vunpack.c.l.b16 %v534
    %v1121 = vunpack.c.l.b16 %v535
    %v1122 = vunpack.c.l.b16 %v536
    %v1123 = vunpack.c.l.b16 %v537
    %v1124 = vunpack.c.l.b16 %v538
    %v1125 = vunpack.c.l.b16 %v539
    %v1126 = vunpack.c.l.b16 %v540
    %v1127 = vunpack.c.l.b16 %v541
    %v1128 = vunpack.c.l.b16 %v542
    %v1129 = vunpack.c.l.b16 %v543
    %v1130 = vunpack.c.l.b16 %v544
    %v1131 = vunpack.c.l.b16 %v545
    %v1132 = vunpack.c.l.b16 %v546
    %v1133 = vunpack.c.l.b16 %v547
    %v1134 = vunpack.c.l.b16 %v548
    %v1135 = vunpack.c.l.b16 %v549
    %v1136 = vunpack.c.l.b16 %v550
    %v1137 = vunpack.c.l.b16 %v551
    %v1138 = vunpack.c.l.b16 %v552
    %v1139 = vunpack.c.l.b16 %v553
    %v1140 = vunpack.c.l.b16 %v554
    %v1141 = vunpack.c.l.b16 %v555
    %v1142 = vunpack.c.l.b16 %v556
    %v1143 = vunpack.c.l.b16 %v557
    %v1144 = vunpack.c.l.b16 %v558
    %v1145 = vunpack.c.l.b16 %v559
    %v1146 = vunpack.c.l.b16 %v560
    %v1147 = vunpack.c.l.b16 %v561
    %v1148 = vunpack.c.l.b16 %v562
    %v1149 = vunpack.c.l.b16 %v563
    %v1150 = vunpack.c.l.b16 %v564
    %v1151 = vunpack.c.l.b16 %v565
    %v1152 = vunpack.c.l.b16 %v566
    %v1153 = vunpack.c.l.b16 %v567
    %v1154 = vunpack.c.l.b16 %v568
    %v1155 = vunpack.c.l.b16 %v569
    %v1156 = vunpack.c.l.b16 %v570
    %v1157 = vunpack.c.l.b16 %v571
    %v1158 = vunpack.c.l.b16 %v572
    %v1159 = vunpack.c.l.b16 %v573
    %v1160 = vunpack.c.l.b16 %v574
    %v1161 = vunpack.c.l.b16 %v575
    %v1162 = vunpack.c.l.b16 %v576
    %v1163 = vunpack.c.l.b16 %v577
    %v1164 = vunpack.c.l.b16 %v578
    %v1165 = vunpack.c.l.b16 %v579
    %v1166 = vunpack.c.l.b16 %v580
    %v1167 = vunpack.c.l.b16 %v581
    %v1168 = vunpack.c.l.b16 %v582
    %v1169 = vunpack.c.l.b16 %v583
    %v1170 = vunpack.c.l.b16 %v584
    %v1171 = vunpack.c.l.b16 %v585
    %v1172 = vunpack.c.l.b16 %v586
    %v1173 = vunpack.c.l.b16 %v587
    %v1174 = vunpack.c.l.b16 %v588
    %v1175 = vunpack.c.l.b16 %v589
    %v1176 = vunpack.c.l.b16 %v590
    %v1177 = vunpack.c.l.b16 %v591
    %v1178 = vunpack.c.l.b16 %v592
    %v1179 = vunpack.c.l.b16 %v593
    %v1180 = vunpack.c.l.b16 %v594
    %v1181 = vunpack.c.l.b16 %v595
    %v1182 = vunpack.c.l.b16 %v596
    %v1183 = vunpack.c.l.b16 %v597
    %v1184 = vunpack.c.l.b16 %v598
    %v1185 = vunpack.c.l.b16 %v599
    %v1186 = vunpack.c.l.b16 %v600
    %v1187 = vunpack.c.l.b16 %v601
    %v1188 = vunpack.c.l.b16 %v602
    %v1189 = vunpack.c.l.b16 %v603
    %v1190 = vunpack.c.l.b16 %v604
    %v1191 = vunpack.c.l.b16 %v605
    %v1192 = vunpack.c.l.b16 %v606
    %v1193 = vunpack.c.l.b16 %v607
    %v1194 = vunpack.c.l.b16 %v608
    %v1195 = vunpack.c.l.b16 %v609
    %v1196 = vunpack.c.l.b16 %v610
    %v1197 = vunpack.c.l.b16 %v611
    %v1198 = vunpack.c.l.b16 %v612
    %v1199 = vunpack.c.l.b16 %v613
    %v1200 = vunpack.c.l.b16 %v614
    %v1201 = vunpack.c.l.b16 %v615
    %v1202 = vunpack.c.l.b16 %v616
    %v1203 = vunpack.c.l.b16 %v617
    %v1204 = vunpack.c.l.b16 %v618
    %v1205 = vunpack.c.l.b16 %v619
    %v1206 = vunpack.c.l.b16 %v620
    %v1207 = vunpack.c.l.b16 %v621
    %v1208 = vunpack.c.l.b16 %v622
    %v1209 = vunpack.c.l.b16 %v623
    %v1210 = vunpack.c.l.b16 %v624
    %v1211 = vunpack.c.l.b16 %v625
    %v1212 = vunpack.c.l.b16 %v626
    %v1213 = vunpack.c.l.b16 %v627
    %v1214 = vunpack.c.l.b16 %v628
    %v1215 = vunpack.c.l.b16 %v629
    %v1216 = vunpack.c.l.b16 %v630
    %v1217 = vunpack.c.l.b16 %v631
    %v1218 = vunpack.c.l.b16 %v632
    %v1219 = vunpack.c.l.b16 %v633
    %v1220 = vunpack.c.l.b16 %v634
    %v1221 = vunpack.c.l.b16 %v635
    %v1222 = vunpack.c.l.b16 %v636
    %v1223 = vunpack.c.l.b16 %v637
    %v1224 = vunpack.c.l.b16 %v638
    %v1225 = vunpack.c.l.b16 %v639
    %v1226 = vunpack.c.l.b16 %v640
    %v1227 = vunpack.c.l.b16 %v641
    %v1228 = vunpack.c.l.b16 %v642
    %v1229 = vunpack.c.l.b16 %v643
    %v1230 = vunpack.c.l.b16 %v644
    %v1231 = vunpack.c.l.b16 %v645
    %v1232 = vunpack.c.l.b16 %v646
    %v1233 = vunpack.c.l.b16 %v647
    %v1234 = vpack.c.b16 %v1107, %v1106
    %v1235 = vpack.c.b16 %v1109, %v1108
    %v1236 = vpack.c.b16 %v1111, %v1110
    %v1237 = vpack.c.b16 %v1113, %v1112
    %v1238 = vpack.c.b16 %v1115, %v1114
    %v1239 = vpack.c.b16 %v1117, %v1116
    %v1240 = vpack.c.b16 %v1119, %v1118
    %v1241 = vpack.c.b16 %v1121, %v1120
    %v1242 = vpack.c.b16 %v1123, %v1122
    %v1243 = vpack.c.b16 %v1125, %v1124
    %v1244 = vpack.c.b16 %v1127, %v1126
    %v1245 = vpack.c.b16 %v1129, %v1128
    %v1246 = vpack.c.b16 %v1131, %v1130
    %v1247 = vpack.c.b16 %v1133, %v1132
    %v1248 = vpack.c.b16 %v1135, %v1134
    %v1249 = vpack.c.b16 %v1137, %v1136
    %v1250 = vpack.c.b16 %v1139, %v1138
    %v1251 = vpack.c.b16 %v1141, %v1140
    %v1252 = vpack.c.b16 %v1143, %v1142
    %v1253 = vpack.c.b16 %v1145, %v1144
    %v1254 = vpack.c.b16 %v1147, %v1146
    %v1255 = vpack.c.b16 %v1149, %v1148
    %v1256 = vpack.c.b16 %v1151, %v1150
    %v1257 = vpack.c.b16 %v1153, %v1152
    %v1258 = vpack.c.b16 %v1155, %v1154
    %v1259 = vpack.c.b16 %v1157, %v1156
    %v1260 = vpack.c.b16 %v1159, %v1158
    %v1261 = vpack.c.b16 %v1161, %v1160
    %v1262 = vpack.c.b16 %v1163, %v1162
    %v1263 = vpack.c.b16 %v1165, %v1164
    %v1264 = vpack.c.b16 %v1167, %v1166
    %v1265 = vpack.c.b16 %v1169, %v1168
    %v1266 = vpack.c.b16 %v1171, %v1170
    %v1267 = vpack.c.b16 %v1173, %v1172
    %v1268 = vpack.c.b16 %v1175, %v1174
    %v1269 = vpack.c.b16 %v1177, %v1176
    %v1270 = vpack.c.b16 %v1179, %v1178
    %v1271 = vpack.c.b16 %v1181, %v1180
    %v1272 = vpack.c.b16 %v1183, %v1182
    %v1273 = vpack.c.b16 %v1185, %v1184
    %v1274 = vpack.c.b16 %v1187, %v1186
    %v1275 = vpack.c.b16 %v1189, %v1188
    %v1276 = vpack.c.b16 %v1191, %v1190
    %v1277 = vpack.c.b16 %v1193, %v1192
    %v1278 = vpack.c.b16 %v1195, %v1194
    %v1279 = vpack.c.b16 %v1197, %v1196
    %v1280 = vpack.c.b16 %v1199, %v1198
    %v1281 = vpack.c.b16 %v1201, %v1200
    %v1282 = vpack.c.b16 %v1203, %v1202
    %v1283 = vpack.c.b16 %v1205, %v1204
    %v1284 = vpack.c.b16 %v1207, %v1206
    %v1285 = vpack.c.b16 %v1209, %v1208
    %v1286 = vpack.c.b16 %v1211, %v1210
    %v1287 = vpack.c.b16 %v1213, %v1212
    %v1288 = vpack.c.b16 %v1215, %v1214
    %v1289 = vpack.c.b16 %v1217, %v1216
    %v1290 = vpack.c.b16 %v1219, %v1218
    %v1291 = vpack.c.b16 %v1221, %v1220
    %v1292 = vpack.c.b16 %v1223, %v1222
    %v1293 = vpack.c.b16 %v1225, %v1224
    %v1294 = vpack.c.b16 %v1227, %v1226
    %v1295 = vpack.c.b16 %v1229, %v1228
    %v1296 = vpack.c.b16 %v1231, %v1230
    %v1297 = vpack.c.b16 %v1233, %v1232
    %1362 = vmatprep.subr.bf16.mxu0 0
    %1363 = vmatpush1.bf16.msra.mxu0 %v1234
    %1364 = vmatprep.subr.bf16.mxu0 0
    %1365 = vmatpush1.bf16.msra.mxu0 %v1235
    %1366 = vmatprep.subr.bf16.mxu0 0
    %1367 = vmatpush1.bf16.msra.mxu0 %v1236
    %1368 = vmatprep.subr.bf16.mxu0 0
    %1369 = vmatpush1.bf16.msra.mxu0 %v1237
    %1370 = vmatprep.subr.bf16.mxu0 0
    %1371 = vmatpush1.bf16.msra.mxu0 %v1238
    %1372 = vmatprep.subr.bf16.mxu0 0
    %1373 = vmatpush1.bf16.msra.mxu0 %v1239
    %1374 = vmatprep.subr.bf16.mxu0 0
    %1375 = vmatpush1.bf16.msra.mxu0 %v1240
    %1376 = vmatprep.subr.bf16.mxu0 0
    %1377 = vmatpush1.bf16.msra.mxu0 %v1241
    %1378 = vmatprep.subr.bf16.mxu0 0
    %1379 = vmatpush1.bf16.msra.mxu0 %v1242
    %1380 = vmatprep.subr.bf16.mxu0 0
    %1381 = vmatpush1.bf16.msra.mxu0 %v1243
    %1382 = vmatprep.subr.bf16.mxu0 0
    %1383 = vmatpush1.bf16.msra.mxu0 %v1244
    %1384 = vmatprep.subr.bf16.mxu0 0
    %1385 = vmatpush1.bf16.msra.mxu0 %v1245
    %1386 = vmatprep.subr.bf16.mxu0 0
    %1387 = vmatpush1.bf16.msra.mxu0 %v1246
    %1388 = vmatprep.subr.bf16.mxu0 0
    %1389 = vmatpush1.bf16.msra.mxu0 %v1247
    %1390 = vmatprep.subr.bf16.mxu0 0
    %1391 = vmatpush1.bf16.msra.mxu0 %v1248
    %1392 = vmatprep.subr.bf16.mxu0 0
    %1393 = vmatpush1.bf16.msra.mxu0 %v1249
    %1394 = vmatprep.mubr.bf16.mxu0 %v971
    %1395 = vmatmul.mubr.bf16.gmra.mrb[0].mxu0 %v970
    %v1396 = vpop.f32.mrb[0].mxu0
    %v1397 = vadd.f32 0.0, %v1396
    %v1398 = vpop.f32.mrb[0].mxu0
    %v1399 = vpop.f32.mrb[0].mxu0
    %v1400 = vadd.f32 0.0, %v1399
    %v1401 = vpop.f32.mrb[0].mxu0
    %1402 = vdwg.mxu0
    %1403 = vmatprep.subr.bf16.mxu0 0
    %1404 = vmatpush1.bf16.msra.mxu0 %v1250
    %1405 = vmatprep.subr.bf16.mxu0 0
    %1406 = vmatpush1.bf16.msra.mxu0 %v1251
    %1407 = vmatprep.subr.bf16.mxu0 0
    %1408 = vmatpush1.bf16.msra.mxu0 %v1252
    %1409 = vmatprep.subr.bf16.mxu0 0
    %1410 = vmatpush1.bf16.msra.mxu0 %v1253
    %1411 = vmatprep.subr.bf16.mxu0 0
    %1412 = vmatpush1.bf16.msra.mxu0 %v1254
    %1413 = vmatprep.subr.bf16.mxu0 0
    %1414 = vmatpush1.bf16.msra.mxu0 %v1255
    %1415 = vmatprep.subr.bf16.mxu0 0
    %1416 = vmatpush1.bf16.msra.mxu0 %v1256
    %1417 = vmatprep.subr.bf16.mxu0 0
    %1418 = vmatpush1.bf16.msra.mxu0 %v1257
    %1419 = vmatprep.subr.bf16.mxu0 0
    %1420 = vmatpush1.bf16.msra.mxu0 %v1258
    %1421 = vmatprep.subr.bf16.mxu0 0
    %1422 = vmatpush1.bf16.msra.mxu0 %v1259
    %1423 = vmatprep.subr.bf16.mxu0 0
    %1424 = vmatpush1.bf16.msra.mxu0 %v1260
    %1425 = vmatprep.subr.bf16.mxu0 0
    %1426 = vmatpush1.bf16.msra.mxu0 %v1261
    %1427 = vmatprep.subr.bf16.mxu0 0
    %1428 = vmatpush1.bf16.msra.mxu0 %v1262
    %1429 = vmatprep.subr.bf16.mxu0 0
    %1430 = vmatpush1.bf16.msra.mxu0 %v1263
    %1431 = vmatprep.subr.bf16.mxu0 0
    %1432 = vmatpush1.bf16.msra.mxu0 %v1264
    %1433 = vmatprep.subr.bf16.mxu0 0
    %1434 = vmatpush1.bf16.msra.mxu0 %v1265
    %1435 = vmatprep.mubr.bf16.mxu0 %v973
    %1436 = vmatmul.mubr.bf16.gmra.mrb[0].mxu0 %v972
    %v1437 = vpop.f32.mrb[0].mxu0
    %v1438 = vadd.f32 %v1397, %v1437
    %v1439 = vpop.f32.mrb[0].mxu0
    %v1440 = vpop.f32.mrb[0].mxu0
    %v1441 = vadd.f32 %v1400, %v1440
    %v1442 = vpop.f32.mrb[0].mxu0
    %1443 = vdwg.mxu0
    %1444 = vmatprep.subr.bf16.mxu0 0
    %1445 = vmatpush1.bf16.msra.mxu0 %v1266
    %1446 = vmatprep.subr.bf16.mxu0 0
    %1447 = vmatpush1.bf16.msra.mxu0 %v1267
    %1448 = vmatprep.subr.bf16.mxu0 0
    %1449 = vmatpush1.bf16.msra.mxu0 %v1268
    %1450 = vmatprep.subr.bf16.mxu0 0
    %1451 = vmatpush1.bf16.msra.mxu0 %v1269
    %1452 = vmatprep.subr.bf16.mxu0 0
    %1453 = vmatpush1.bf16.msra.mxu0 %v1270
    %1454 = vmatprep.subr.bf16.mxu0 0
    %1455 = vmatpush1.bf16.msra.mxu0 %v1271
    %1456 = vmatprep.subr.bf16.mxu0 0
    %1457 = vmatpush1.bf16.msra.mxu0 %v1272
    %1458 = vmatprep.subr.bf16.mxu0 0
    %1459 = vmatpush1.bf16.msra.mxu0 %v1273
    %1460 = vmatprep.subr.bf16.mxu0 0
    %1461 = vmatpush1.bf16.msra.mxu0 %v1274
    %1462 = vmatprep.subr.bf16.mxu0 0
    %1463 = vmatpush1.bf16.msra.mxu0 %v1275
    %1464 = vmatprep.subr.bf16.mxu0 0
    %1465 = vmatpush1.bf16.msra.mxu0 %v1276
    %1466 = vmatprep.subr.bf16.mxu0 0
    %1467 = vmatpush1.bf16.msra.mxu0 %v1277
    %1468 = vmatprep.subr.bf16.mxu0 0
    %1469 = vmatpush1.bf16.msra.mxu0 %v1278
    %1470 = vmatprep.subr.bf16.mxu0 0
    %1471 = vmatpush1.bf16.msra.mxu0 %v1279
    %1472 = vmatprep.subr.bf16.mxu0 0
    %1473 = vmatpush1.bf16.msra.mxu0 %v1280
    %1474 = vmatprep.subr.bf16.mxu0 0
    %1475 = vmatpush1.bf16.msra.mxu0 %v1281
    %1476 = vmatprep.mubr.bf16.mxu0 %v975
    %1477 = vmatmul.mubr.bf16.gmra.mrb[0].mxu0 %v974
    %v1478 = vpop.f32.mrb[0].mxu0
    %v1479 = vadd.f32 %v1438, %v1478
    %v1480 = vpop.f32.mrb[0].mxu0
    %v1481 = vpop.f32.mrb[0].mxu0
    %v1482 = vadd.f32 %v1441, %v1481
    %v1483 = vpop.f32.mrb[0].mxu0
    %1484 = vdwg.mxu0
    %1485 = vmatprep.subr.bf16.mxu0 0
    %1486 = vmatpush1.bf16.msra.mxu0 %v1282
    %1487 = vmatprep.subr.bf16.mxu0 0
    %1488 = vmatpush1.bf16.msra.mxu0 %v1283
    %1489 = vmatprep.subr.bf16.mxu0 0
    %1490 = vmatpush1.bf16.msra.mxu0 %v1284
    %1491 = vmatprep.subr.bf16.mxu0 0
    %1492 = vmatpush1.bf16.msra.mxu0 %v1285
    %1493 = vmatprep.subr.bf16.mxu0 0
    %1494 = vmatpush1.bf16.msra.mxu0 %v1286
    %1495 = vmatprep.subr.bf16.mxu0 0
    %1496 = vmatpush1.bf16.msra.mxu0 %v1287
    %1497 = vmatprep.subr.bf16.mxu0 0
    %1498 = vmatpush1.bf16.msra.mxu0 %v1288
    %1499 = vmatprep.subr.bf16.mxu0 0
    %1500 = vmatpush1.bf16.msra.mxu0 %v1289
    %1501 = vmatprep.subr.bf16.mxu0 0
    %1502 = vmatpush1.bf16.msra.mxu0 %v1290
    %1503 = vmatprep.subr.bf16.mxu0 0
    %1504 = vmatpush1.bf16.msra.mxu0 %v1291
    %1505 = vmatprep.subr.bf16.mxu0 0
    %1506 = vmatpush1.bf16.msra.mxu0 %v1292
    %1507 = vmatprep.subr.bf16.mxu0 0
    %1508 = vmatpush1.bf16.msra.mxu0 %v1293
    %1509 = vmatprep.subr.bf16.mxu0 0
    %1510 = vmatpush1.bf16.msra.mxu0 %v1294
    %1511 = vmatprep.subr.bf16.mxu0 0
    %1512 = vmatpush1.bf16.msra.mxu0 %v1295
    %1513 = vmatprep.subr.bf16.mxu0 0
    %1514 = vmatpush1.bf16.msra.mxu0 %v1296
    %1515 = vmatprep.subr.bf16.mxu0 0
    %1516 = vmatpush1.bf16.msra.mxu0 %v1297
    %1517 = vmatprep.mubr.bf16.mxu0 %v977
    %1518 = vmatmul.mubr.bf16.gmra.mrb[0].mxu0 %v976
    %v1519 = vpop.f32.mrb[0].mxu0
    %v1520 = vadd.f32 %v1479, %v1519
    %v1521 = vpop.f32.mrb[0].mxu0
    %v1522 = vpop.f32.mrb[0].mxu0
    %v1523 = vadd.f32 %v1482, %v1522
    %v1524 = vpop.f32.mrb[0].mxu0
    %1525 = vdwg.mxu0
    %v1526 = vpack.c.bf16 %v1523, %v1520
    %v1527 = vld [vmem:[%s12] sm:$0x1]
    %v1529 = vlaneseq
    %v1530 = vshrl.u32 %v1529, 7
    %v1531 = vsub.s32 0, %v1530
    %v1532 = vrot.slane %v1527, %v1531
    %v1536 = vunpack.c.l.b16 %v502
    %v1537 = vunpack.c.l.b16 %v503
    %v1538 = vpack.c.b16 %v1537, %v1536
    %v1540 = vsel %vm453, %v1538, 0
    %1542 = vmatprep.subr.bf16.mxu0 0
    %1543 = vmatpush1.bf16.msra.mxu0 %v1526
    %1544 = vmatprep.subr.bf16.mxu0 0
    %1545 = vmatpush1.bf16.msra.mxu0 0
    %1546 = vmatprep.subr.bf16.mxu0 0
    %1547 = vmatpush1.bf16.msra.mxu0 0
    %1548 = vmatprep.subr.bf16.mxu0 0
    %1549 = vmatpush1.bf16.msra.mxu0 0
    %1550 = vmatprep.subr.bf16.mxu0 0
    %1551 = vmatpush1.bf16.msra.mxu0 0
    %1552 = vmatprep.subr.bf16.mxu0 0
    %1553 = vmatpush1.bf16.msra.mxu0 0
    %1554 = vmatprep.subr.bf16.mxu0 0
    %1555 = vmatpush1.bf16.msra.mxu0 0
    %1556 = vmatprep.subr.bf16.mxu0 0
    %1557 = vmatpush1.bf16.msra.mxu0 0
    %1558 = vmatprep.subr.bf16.mxu0 0
    %1559 = vmatpush1.bf16.msra.mxu0 0
    %1560 = vmatprep.subr.bf16.mxu0 0
    %1561 = vmatpush1.bf16.msra.mxu0 0
    %1562 = vmatprep.subr.bf16.mxu0 0
    %1563 = vmatpush1.bf16.msra.mxu0 0
    %1564 = vmatprep.subr.bf16.mxu0 0
    %1565 = vmatpush1.bf16.msra.mxu0 0
    %1566 = vmatprep.subr.bf16.mxu0 0
    %1567 = vmatpush1.bf16.msra.mxu0 0
    %1568 = vmatprep.subr.bf16.mxu0 0
    %1569 = vmatpush1.bf16.msra.mxu0 0
    %1570 = vmatprep.subr.bf16.mxu0 0
    %1571 = vmatpush1.bf16.msra.mxu0 0
    %1572 = vmatprep.subr.bf16.mxu0 0
    %1573 = vmatpush1.bf16.msra.mxu0 0
    %1574 = vmatprep.mubr.bf16.mxu0 0
    %1575 = vmatmul.mubr.bf16.gmra.mrb[0].mxu0 %v1540
    %v1576 = vpop.f32.mrb[0].mxu0
    %v1577 = vadd.f32 %v1532, %v1576
    %v1578 = vpop.f32.mrb[0].mxu0
    %v1579 = vpop.f32.mrb[0].mxu0
    %v1580 = vadd.f32 %v1532, %v1579
    %v1581 = vpop.f32.mrb[0].mxu0
    %1582 = vdwg.mxu0
    %v1583 = vmax.f32 %v1577, 0.0
    %v1584 = vmax.f32 %v1580, 0.0
    %v1585 = vpack.c.bf16 %v1584, %v1583
    %v1586 = vld [vmem:[%s13] sm:$0xf]
    %v1587 = vld [vmem:[%s13 + $0x4] sm:$0xf]
    %v1588 = vld [vmem:[%s13 + $0x8] sm:$0xf]
    %v1589 = vld [vmem:[%s13 + $0xc] sm:$0xf]
    %v1590 = vld [vmem:[%s14] sm:$0x1]
    %v1592 = vlaneseq
    %v1593 = vshrl.u32 %v1592, 7
    %v1594 = vsub.s32 0, %v1593
    %v1595 = vrot.slane %v1590, %v1594
    %v1601 = vunpack.c.l.b16 %v1586
    %v1602 = vunpack.c.l.b16 %v1587
    %v1603 = vunpack.c.l.b16 %v1588
    %v1604 = vunpack.c.l.b16 %v1589
    %v1605 = vpack.c.b16 %v1602, %v1601
    %v1606 = vpack.c.b16 %v1604, %v1603
    %v1610 = vsel %vm259, %v1585, 0
    %1612 = vmatprep.subr.bf16.mxu0 0
    %1613 = vmatpush1.bf16.msra.mxu0 %v1605
    %1614 = vmatprep.subr.bf16.mxu0 0
    %1615 = vmatpush1.bf16.msra.mxu0 %v1606
    %1616 = vmatprep.subr.bf16.mxu0 0
    %1617 = vmatpush1.bf16.msra.mxu0 0
    %1618 = vmatprep.subr.bf16.mxu0 0
    %1619 = vmatpush1.bf16.msra.mxu0 0
    %1620 = vmatprep.subr.bf16.mxu0 0
    %1621 = vmatpush1.bf16.msra.mxu0 0
    %1622 = vmatprep.subr.bf16.mxu0 0
    %1623 = vmatpush1.bf16.msra.mxu0 0
    %1624 = vmatprep.subr.bf16.mxu0 0
    %1625 = vmatpush1.bf16.msra.mxu0 0
    %1626 = vmatprep.subr.bf16.mxu0 0
    %1627 = vmatpush1.bf16.msra.mxu0 0
    %1628 = vmatprep.subr.bf16.mxu0 0
    %1629 = vmatpush1.bf16.msra.mxu0 0
    %1630 = vmatprep.subr.bf16.mxu0 0
    %1631 = vmatpush1.bf16.msra.mxu0 0
    %1632 = vmatprep.subr.bf16.mxu0 0
    %1633 = vmatpush1.bf16.msra.mxu0 0
    %1634 = vmatprep.subr.bf16.mxu0 0
    %1635 = vmatpush1.bf16.msra.mxu0 0
    %1636 = vmatprep.subr.bf16.mxu0 0
    %1637 = vmatpush1.bf16.msra.mxu0 0
    %1638 = vmatprep.subr.bf16.mxu0 0
    %1639 = vmatpush1.bf16.msra.mxu0 0
    %1640 = vmatprep.subr.bf16.mxu0 0
    %1641 = vmatpush1.bf16.msra.mxu0 0
    %1642 = vmatprep.subr.bf16.mxu0 0
    %1643 = vmatpush1.bf16.msra.mxu0 0
    %1644 = vmatprep.mubr.bf16.mxu0 0
    %1645 = vmatmul.mubr.bf16.gmra.mrb[0].mxu0 %v1610
    %v1646 = vpop.f32.mrb[0].mxu0
    %v1647 = vadd.f32 %v1595, %v1646
    %v1648 = vpop.f32.mrb[0].mxu0
    %v1649 = vpop.f32.mrb[0].mxu0
    %v1650 = vadd.f32 %v1595, %v1649
    %v1651 = vpop.f32.mrb[0].mxu0
    %1652 = vdwg.mxu0
    %v1653 = vld [vmem:[%s15] sm:$0xf]
    %v1654 = vld [vmem:[%s15 + $0x4] sm:$0xf]
    %v1655 = vld [vmem:[%s15 + $0x8] sm:$0xf]
    %v1656 = vld [vmem:[%s15 + $0xc] sm:$0xf]
    %v1657 = vld [vmem:[%s16] sm:$0x1]
    %v1659 = vlaneseq
    %v1660 = vshrl.u32 %v1659, 7
    %v1661 = vsub.s32 0, %v1660
    %v1662 = vrot.slane %v1657, %v1661
    %v1668 = vunpack.c.l.b16 %v1653
    %v1669 = vunpack.c.l.b16 %v1654
    %v1670 = vunpack.c.l.b16 %v1655
    %v1671 = vunpack.c.l.b16 %v1656
    %v1672 = vpack.c.b16 %v1669, %v1668
    %v1673 = vpack.c.b16 %v1671, %v1670
    %v1677 = vsel %vm259, %v648, 0
    %1679 = vmatprep.subr.bf16.mxu0 0
    %1680 = vmatpush1.bf16.msra.mxu0 %v1672
    %1681 = vmatprep.subr.bf16.mxu0 0
    %1682 = vmatpush1.bf16.msra.mxu0 %v1673
    %1683 = vmatprep.subr.bf16.mxu0 0
    %1684 = vmatpush1.bf16.msra.mxu0 0
    %1685 = vmatprep.subr.bf16.mxu0 0
    %1686 = vmatpush1.bf16.msra.mxu0 0
    %1687 = vmatprep.subr.bf16.mxu0 0
    %1688 = vmatpush1.bf16.msra.mxu0 0
    %1689 = vmatprep.subr.bf16.mxu0 0
    %1690 = vmatpush1.bf16.msra.mxu0 0
    %1691 = vmatprep.subr.bf16.mxu0 0
    %1692 = vmatpush1.bf16.msra.mxu0 0
    %1693 = vmatprep.subr.bf16.mxu0 0
    %1694 = vmatpush1.bf16.msra.mxu0 0
    %1695 = vmatprep.subr.bf16.mxu0 0
    %1696 = vmatpush1.bf16.msra.mxu0 0
    %1697 = vmatprep.subr.bf16.mxu0 0
    %1698 = vmatpush1.bf16.msra.mxu0 0
    %1699 = vmatprep.subr.bf16.mxu0 0
    %1700 = vmatpush1.bf16.msra.mxu0 0
    %1701 = vmatprep.subr.bf16.mxu0 0
    %1702 = vmatpush1.bf16.msra.mxu0 0
    %1703 = vmatprep.subr.bf16.mxu0 0
    %1704 = vmatpush1.bf16.msra.mxu0 0
    %1705 = vmatprep.subr.bf16.mxu0 0
    %1706 = vmatpush1.bf16.msra.mxu0 0
    %1707 = vmatprep.subr.bf16.mxu0 0
    %1708 = vmatpush1.bf16.msra.mxu0 0
    %1709 = vmatprep.subr.bf16.mxu0 0
    %1710 = vmatpush1.bf16.msra.mxu0 0
    %1711 = vmatprep.mubr.bf16.mxu0 0
    %1712 = vmatmul.mubr.bf16.gmra.mrb[0].mxu0 %v1677
    %v1713 = vpop.f32.mrb[0].mxu0
    %v1714 = vadd.f32 %v1662, %v1713
    %v1715 = vpop.f32.mrb[0].mxu0
    %v1716 = vpop.f32.mrb[0].mxu0
    %v1717 = vadd.f32 %v1662, %v1716
    %v1718 = vpop.f32.mrb[0].mxu0
    %1719 = vdwg.mxu0
    %v1720 = vadd.f32 %v1647, %v1714
    %v1721 = vadd.f32 %v1650, %v1717
    %v1722 = vxor.u32 %v1720, 2147483648
    %v1723 = vxor.u32 %v1721, 2147483648
    %v1724 = vmul.f32 %v1722, 1.442695
    %v1725 = vpow.pop %v1724
    %v1726 = vmul.f32 %v1723, 1.442695
    %v1727 = vpow.pop %v1726
    %v1728 = vadd.f32 %v1725, 1.0
    %v1729 = vadd.f32 %v1727, 1.0
    %v1730 = vrcp.pop %v1728
    %v1731 = vmul.f32 1.0, %v1730
    %v1732 = vrcp.pop %v1729
    %v1733 = vmul.f32 1.0, %v1732
    %1736 = vrot.lane.b32.xlu0 %v1714, 64
    %v1737 = vpop.permute.xlu0 %1736
    %1738 = vrot.lane.b32.xlu0 %v1717, 64
    %v1739 = vpop.permute.xlu0 %1738
    %v1742 = vmul.f32 %v1731, %v1737
    %v1743 = vmul.f32 %v1733, %v1739
    %1746 = vrot.lane.b32.xlu0 %v1742, 64
    %v1747 = vpop.permute.xlu0 %1746
    %1748 = vrot.lane.b32.xlu0 %v1743, 64
    %v1749 = vpop.permute.xlu0 %1748
    %v1752 = vadd.f32 %v1647, %v1747
    %v1753 = vadd.f32 %v1650, %v1749
    %v1754 = vtanh.pop %v1752
    %v1755 = vtanh.pop %v1753
    %v1756 = vsub.f32 1.0, %v1731
    %v1757 = vsub.f32 1.0, %v1733
    %1760 = vrot.lane.b32.xlu0 %v1754, 96
    %v1761 = vpop.permute.xlu0 %1760
    %1762 = vrot.lane.b32.xlu0 %v1755, 96
    %v1763 = vpop.permute.xlu0 %1762
    %v1766 = vmul.f32 %v1756, %v1761
    %v1767 = vmul.f32 %v1757, %v1763
    %1770 = vrot.lane.b32.xlu0 %v498, 32
    %v1771 = vpop.permute.xlu0 %1770
    %1772 = vrot.lane.b32.xlu0 %v499, 32
    %v1773 = vpop.permute.xlu0 %1772
    %v1776 = vmul.f32 %v1731, %v1771
    %v1777 = vmul.f32 %v1733, %v1773
    %v1778 = vadd.f32 %v1766, %v1776
    %v1779 = vadd.f32 %v1767, %v1777
    %v1780 = vpack.c.bf16 %v1779, %v1778
    %1782 = vrot.lane.b32.xlu0 %v1780, 96
    %v1783 = vpop.permute.xlu0 %1782
    %1785 = vmatprep.subr.bf16.mxu0 0
    %1786 = vmatpush1.bf16.msra.mxu0 %v1783
    %1787 = vmatprep.subr.bf16.mxu0 0
    %1788 = vmatpush1.bf16.msra.mxu0 0
    %1789 = vmatprep.subr.bf16.mxu0 0
    %1790 = vmatpush1.bf16.msra.mxu0 0
    %1791 = vmatprep.subr.bf16.mxu0 0
    %1792 = vmatpush1.bf16.msra.mxu0 0
    %1793 = vmatprep.subr.bf16.mxu0 0
    %1794 = vmatpush1.bf16.msra.mxu0 0
    %1795 = vmatprep.subr.bf16.mxu0 0
    %1796 = vmatpush1.bf16.msra.mxu0 0
    %1797 = vmatprep.subr.bf16.mxu0 0
    %1798 = vmatpush1.bf16.msra.mxu0 0
    %1799 = vmatprep.subr.bf16.mxu0 0
    %1800 = vmatpush1.bf16.msra.mxu0 0
    %1801 = vmatprep.subr.bf16.mxu0 0
    %1802 = vmatpush1.bf16.msra.mxu0 0
    %1803 = vmatprep.subr.bf16.mxu0 0
    %1804 = vmatpush1.bf16.msra.mxu0 0
    %1805 = vmatprep.subr.bf16.mxu0 0
    %1806 = vmatpush1.bf16.msra.mxu0 0
    %1807 = vmatprep.subr.bf16.mxu0 0
    %1808 = vmatpush1.bf16.msra.mxu0 0
    %1809 = vmatprep.subr.bf16.mxu0 0
    %1810 = vmatpush1.bf16.msra.mxu0 0
    %1811 = vmatprep.subr.bf16.mxu0 0
    %1812 = vmatpush1.bf16.msra.mxu0 0
    %1813 = vmatprep.subr.bf16.mxu0 0
    %1814 = vmatpush1.bf16.msra.mxu0 0
    %1815 = vmatprep.subr.bf16.mxu0 0
    %1816 = vmatpush1.bf16.msra.mxu0 0
    %1817 = vmatprep.mubr.bf16.mxu0 0
    %1818 = vmatmul.mubr.bf16.gmra.mrb[0].mxu0 %v655
    %v1819 = vpop.f32.mrb[0].mxu0
    %v1820 = vadd.f32 0.0, %v1819
    %v1821 = vpop.f32.mrb[0].mxu0
    %v1822 = vpop.f32.mrb[0].mxu0
    %v1823 = vadd.f32 0.0, %v1822
    %v1824 = vpop.f32.mrb[0].mxu0
    %1825 = vdwg.mxu0
    %v1826 = vpack.c.bf16 %v1823, %v1820
    %v1828 = vsel %vm259, %v1826, 0
    %1830 = vmatprep.subr.bf16.mxu0 %v748
    %1831 = vmatpush1.bf16.msra.mxu0 %v747
    %1832 = vmatprep.subr.bf16.mxu0 %v756
    %1833 = vmatpush1.bf16.msra.mxu0 %v755
    %1834 = vmatprep.subr.bf16.mxu0 0
    %1835 = vmatpush1.bf16.msra.mxu0 0
    %1836 = vmatprep.subr.bf16.mxu0 0
    %1837 = vmatpush1.bf16.msra.mxu0 0
    %1838 = vmatprep.subr.bf16.mxu0 0
    %1839 = vmatpush1.bf16.msra.mxu0 0
    %1840 = vmatprep.subr.bf16.mxu0 0
    %1841 = vmatpush1.bf16.msra.mxu0 0
    %1842 = vmatprep.subr.bf16.mxu0 0
    %1843 = vmatpush1.bf16.msra.mxu0 0
    %1844 = vmatprep.subr.bf16.mxu0 0
    %1845 = vmatpush1.bf16.msra.mxu0 0
    %1846 = vmatprep.subr.bf16.mxu0 0
    %1847 = vmatpush1.bf16.msra.mxu0 0
    %1848 = vmatprep.subr.bf16.mxu0 0
    %1849 = vmatpush1.bf16.msra.mxu0 0
    %1850 = vmatprep.subr.bf16.mxu0 0
    %1851 = vmatpush1.bf16.msra.mxu0 0
    %1852 = vmatprep.subr.bf16.mxu0 0
    %1853 = vmatpush1.bf16.msra.mxu0 0
    %1854 = vmatprep.subr.bf16.mxu0 0
    %1855 = vmatpush1.bf16.msra.mxu0 0
    %1856 = vmatprep.subr.bf16.mxu0 0
    %1857 = vmatpush1.bf16.msra.mxu0 0
    %1858 = vmatprep.subr.bf16.mxu0 0
    %1859 = vmatpush1.bf16.msra.mxu0 0
    %1860 = vmatprep.subr.bf16.mxu0 0
    %1861 = vmatpush1.bf16.msra.mxu0 0
    %1862 = vmatprep.mubr.bf16.mxu0 0
    %1863 = vmatmul.mubr.bf16.gmra.mrb[0].mxu0 %v1828
    %v1864 = vpop.f32.mrb[0].mxu0
    %v1865 = vadd.f32 0.0, %v1864
    %v1866 = vpop.f32.mrb[0].mxu0
    %v1867 = vadd.f32 0.0, %v1866
    %v1868 = vpop.f32.mrb[0].mxu0
    %v1869 = vadd.f32 0.0, %v1868
    %v1870 = vpop.f32.mrb[0].mxu0
    %v1871 = vadd.f32 0.0, %v1870
    %1872 = vdwg.mxu0
    %1873 = vmatprep.subr.bf16.mxu0 %v750
    %1874 = vmatpush1.bf16.msra.mxu0 %v749
    %1875 = vmatprep.subr.bf16.mxu0 %v758
    %1876 = vmatpush1.bf16.msra.mxu0 %v757
    %1877 = vmatprep.subr.bf16.mxu0 0
    %1878 = vmatpush1.bf16.msra.mxu0 0
    %1879 = vmatprep.subr.bf16.mxu0 0
    %1880 = vmatpush1.bf16.msra.mxu0 0
    %1881 = vmatprep.subr.bf16.mxu0 0
    %1882 = vmatpush1.bf16.msra.mxu0 0
    %1883 = vmatprep.subr.bf16.mxu0 0
    %1884 = vmatpush1.bf16.msra.mxu0 0
    %1885 = vmatprep.subr.bf16.mxu0 0
    %1886 = vmatpush1.bf16.msra.mxu0 0
    %1887 = vmatprep.subr.bf16.mxu0 0
    %1888 = vmatpush1.bf16.msra.mxu0 0
    %1889 = vmatprep.subr.bf16.mxu0 0
    %1890 = vmatpush1.bf16.msra.mxu0 0
    %1891 = vmatprep.subr.bf16.mxu0 0
    %1892 = vmatpush1.bf16.msra.mxu0 0
    %1893 = vmatprep.subr.bf16.mxu0 0
    %1894 = vmatpush1.bf16.msra.mxu0 0
    %1895 = vmatprep.subr.bf16.mxu0 0
    %1896 = vmatpush1.bf16.msra.mxu0 0
    %1897 = vmatprep.subr.bf16.mxu0 0
    %1898 = vmatpush1.bf16.msra.mxu0 0
    %1899 = vmatprep.subr.bf16.mxu0 0
    %1900 = vmatpush1.bf16.msra.mxu0 0
    %1901 = vmatprep.subr.bf16.mxu0 0
    %1902 = vmatpush1.bf16.msra.mxu0 0
    %1903 = vmatprep.subr.bf16.mxu0 0
    %1904 = vmatpush1.bf16.msra.mxu0 0
    %1905 = vmatprep.mubr.bf16.mxu0 0
    %1906 = vmatmul.mubr.bf16.gmra.mrb[0].mxu0 %v1828
    %v1907 = vpop.f32.mrb[0].mxu0
    %v1908 = vadd.f32 0.0, %v1907
    %v1909 = vpop.f32.mrb[0].mxu0
    %v1910 = vadd.f32 0.0, %v1909
    %v1911 = vpop.f32.mrb[0].mxu0
    %v1912 = vadd.f32 0.0, %v1911
    %v1913 = vpop.f32.mrb[0].mxu0
    %v1914 = vadd.f32 0.0, %v1913
    %1915 = vdwg.mxu0
    %1916 = vmatprep.subr.bf16.mxu0 %v752
    %1917 = vmatpush1.bf16.msra.mxu0 %v751
    %1918 = vmatprep.subr.bf16.mxu0 %v760
    %1919 = vmatpush1.bf16.msra.mxu0 %v759
    %1920 = vmatprep.subr.bf16.mxu0 0
    %1921 = vmatpush1.bf16.msra.mxu0 0
    %1922 = vmatprep.subr.bf16.mxu0 0
    %1923 = vmatpush1.bf16.msra.mxu0 0
    %1924 = vmatprep.subr.bf16.mxu0 0
    %1925 = vmatpush1.bf16.msra.mxu0 0
    %1926 = vmatprep.subr.bf16.mxu0 0
    %1927 = vmatpush1.bf16.msra.mxu0 0
    %1928 = vmatprep.subr.bf16.mxu0 0
    %1929 = vmatpush1.bf16.msra.mxu0 0
    %1930 = vmatprep.subr.bf16.mxu0 0
    %1931 = vmatpush1.bf16.msra.mxu0 0
    %1932 = vmatprep.subr.bf16.mxu0 0
    %1933 = vmatpush1.bf16.msra.mxu0 0
    %1934 = vmatprep.subr.bf16.mxu0 0
    %1935 = vmatpush1.bf16.msra.mxu0 0
    %1936 = vmatprep.subr.bf16.mxu0 0
    %1937 = vmatpush1.bf16.msra.mxu0 0
    %1938 = vmatprep.subr.bf16.mxu0 0
    %1939 = vmatpush1.bf16.msra.mxu0 0
    %1940 = vmatprep.subr.bf16.mxu0 0
    %1941 = vmatpush1.bf16.msra.mxu0 0
    %1942 = vmatprep.subr.bf16.mxu0 0
    %1943 = vmatpush1.bf16.msra.mxu0 0
    %1944 = vmatprep.subr.bf16.mxu0 0
    %1945 = vmatpush1.bf16.msra.mxu0 0
    %1946 = vmatprep.subr.bf16.mxu0 0
    %1947 = vmatpush1.bf16.msra.mxu0 0
    %1948 = vmatprep.mubr.bf16.mxu0 0
    %1949 = vmatmul.mubr.bf16.gmra.mrb[0].mxu0 %v1828
    %v1950 = vpop.f32.mrb[0].mxu0
    %v1951 = vadd.f32 0.0, %v1950
    %v1952 = vpop.f32.mrb[0].mxu0
    %v1953 = vadd.f32 0.0, %v1952
    %v1954 = vpop.f32.mrb[0].mxu0
    %v1955 = vadd.f32 0.0, %v1954
    %v1956 = vpop.f32.mrb[0].mxu0
    %v1957 = vadd.f32 0.0, %v1956
    %1958 = vdwg.mxu0
    %1959 = vmatprep.subr.bf16.mxu0 %v754
    %1960 = vmatpush1.bf16.msra.mxu0 %v753
    %1961 = vmatprep.subr.bf16.mxu0 %v762
    %1962 = vmatpush1.bf16.msra.mxu0 %v761
    %1963 = vmatprep.subr.bf16.mxu0 0
    %1964 = vmatpush1.bf16.msra.mxu0 0
    %1965 = vmatprep.subr.bf16.mxu0 0
    %1966 = vmatpush1.bf16.msra.mxu0 0
    %1967 = vmatprep.subr.bf16.mxu0 0
    %1968 = vmatpush1.bf16.msra.mxu0 0
    %1969 = vmatprep.subr.bf16.mxu0 0
    %1970 = vmatpush1.bf16.msra.mxu0 0
    %1971 = vmatprep.subr.bf16.mxu0 0
    %1972 = vmatpush1.bf16.msra.mxu0 0
    %1973 = vmatprep.subr.bf16.mxu0 0
    %1974 = vmatpush1.bf16.msra.mxu0 0
    %1975 = vmatprep.subr.bf16.mxu0 0
    %1976 = vmatpush1.bf16.msra.mxu0 0
    %1977 = vmatprep.subr.bf16.mxu0 0
    %1978 = vmatpush1.bf16.msra.mxu0 0
    %1979 = vmatprep.subr.bf16.mxu0 0
    %1980 = vmatpush1.bf16.msra.mxu0 0
    %1981 = vmatprep.subr.bf16.mxu0 0
    %1982 = vmatpush1.bf16.msra.mxu0 0
    %1983 = vmatprep.subr.bf16.mxu0 0
    %1984 = vmatpush1.bf16.msra.mxu0 0
    %1985 = vmatprep.subr.bf16.mxu0 0
    %1986 = vmatpush1.bf16.msra.mxu0 0
    %1987 = vmatprep.subr.bf16.mxu0 0
    %1988 = vmatpush1.bf16.msra.mxu0 0
    %1989 = vmatprep.subr.bf16.mxu0 0
    %1990 = vmatpush1.bf16.msra.mxu0 0
    %1991 = vmatprep.mubr.bf16.mxu0 0
    %1992 = vmatmul.mubr.bf16.gmra.mrb[0].mxu0 %v1828
    %v1993 = vpop.f32.mrb[0].mxu0
    %v1994 = vadd.f32 0.0, %v1993
    %v1995 = vpop.f32.mrb[0].mxu0
    %v1996 = vadd.f32 0.0, %v1995
    %v1997 = vpop.f32.mrb[0].mxu0
    %v1998 = vadd.f32 0.0, %v1997
    %v1999 = vpop.f32.mrb[0].mxu0
    %v2000 = vadd.f32 0.0, %v1999
    %2001 = vdwg.mxu0
    %v2002 = vmul.f32 %v1865, %v298
    %v2003 = vmul.f32 %v1867, %v300
    %v2004 = vmul.f32 %v1908, %v341
    %v2005 = vmul.f32 %v1910, %v343
    %v2006 = vmul.f32 %v1951, %v384
    %v2007 = vmul.f32 %v1953, %v386
    %v2008 = vmul.f32 %v1994, %v427
    %v2009 = vmul.f32 %v1996, %v429
    %v2010 = vmul.f32 %v1869, %v302
    %v2011 = vmul.f32 %v1871, %v304
    %v2012 = vmul.f32 %v1912, %v345
    %v2013 = vmul.f32 %v1914, %v347
    %v2014 = vmul.f32 %v1955, %v388
    %v2015 = vmul.f32 %v1957, %v390
    %v2016 = vmul.f32 %v1998, %v431
    %v2017 = vmul.f32 %v2000, %v433
    %v2018 = vpack.c.bf16 %v2010, %v2002
    %v2019 = vpack.c.bf16 %v2011, %v2003
    %v2020 = vpack.c.bf16 %v2012, %v2004
    %v2021 = vpack.c.bf16 %v2013, %v2005
    %v2022 = vpack.c.bf16 %v2014, %v2006
    %v2023 = vpack.c.bf16 %v2015, %v2007
    %v2024 = vpack.c.bf16 %v2016, %v2008
    %v2025 = vpack.c.bf16 %v2017, %v2009
    %2026 = vmatprep.subr.bf16.mxu0 0
    %2027 = vmatpush1.bf16.msra.mxu0 %v1234
    %2028 = vmatprep.subr.bf16.mxu0 0
    %2029 = vmatpush1.bf16.msra.mxu0 %v1235
    %2030 = vmatprep.subr.bf16.mxu0 0
    %2031 = vmatpush1.bf16.msra.mxu0 %v1236
    %2032 = vmatprep.subr.bf16.mxu0 0
    %2033 = vmatpush1.bf16.msra.mxu0 %v1237
    %2034 = vmatprep.subr.bf16.mxu0 0
    %2035 = vmatpush1.bf16.msra.mxu0 %v1238
    %2036 = vmatprep.subr.bf16.mxu0 0
    %2037 = vmatpush1.bf16.msra.mxu0 %v1239
    %2038 = vmatprep.subr.bf16.mxu0 0
    %2039 = vmatpush1.bf16.msra.mxu0 %v1240
    %2040 = vmatprep.subr.bf16.mxu0 0
    %2041 = vmatpush1.bf16.msra.mxu0 %v1241
    %2042 = vmatprep.subr.bf16.mxu0 0
    %2043 = vmatpush1.bf16.msra.mxu0 %v1242
    %2044 = vmatprep.subr.bf16.mxu0 0
    %2045 = vmatpush1.bf16.msra.mxu0 %v1243
    %2046 = vmatprep.subr.bf16.mxu0 0
    %2047 = vmatpush1.bf16.msra.mxu0 %v1244
    %2048 = vmatprep.subr.bf16.mxu0 0
    %2049 = vmatpush1.bf16.msra.mxu0 %v1245
    %2050 = vmatprep.subr.bf16.mxu0 0
    %2051 = vmatpush1.bf16.msra.mxu0 %v1246
    %2052 = vmatprep.subr.bf16.mxu0 0
    %2053 = vmatpush1.bf16.msra.mxu0 %v1247
    %2054 = vmatprep.subr.bf16.mxu0 0
    %2055 = vmatpush1.bf16.msra.mxu0 %v1248
    %2056 = vmatprep.subr.bf16.mxu0 0
    %2057 = vmatpush1.bf16.msra.mxu0 %v1249
    %2058 = vmatprep.mubr.bf16.mxu0 %v2019
    %2059 = vmatmul.mubr.bf16.gmra.mrb[0].mxu0 %v2018
    %v2060 = vpop.f32.mrb[0].mxu0
    %v2061 = vadd.f32 0.0, %v2060
    %v2062 = vpop.f32.mrb[0].mxu0
    %v2063 = vpop.f32.mrb[0].mxu0
    %v2064 = vadd.f32 0.0, %v2063
    %v2065 = vpop.f32.mrb[0].mxu0
    %2066 = vdwg.mxu0
    %2067 = vmatprep.subr.bf16.mxu0 0
    %2068 = vmatpush1.bf16.msra.mxu0 %v1250
    %2069 = vmatprep.subr.bf16.mxu0 0
    %2070 = vmatpush1.bf16.msra.mxu0 %v1251
    %2071 = vmatprep.subr.bf16.mxu0 0
    %2072 = vmatpush1.bf16.msra.mxu0 %v1252
    %2073 = vmatprep.subr.bf16.mxu0 0
    %2074 = vmatpush1.bf16.msra.mxu0 %v1253
    %2075 = vmatprep.subr.bf16.mxu0 0
    %2076 = vmatpush1.bf16.msra.mxu0 %v1254
    %2077 = vmatprep.subr.bf16.mxu0 0
    %2078 = vmatpush1.bf16.msra.mxu0 %v1255
    %2079 = vmatprep.subr.bf16.mxu0 0
    %2080 = vmatpush1.bf16.msra.mxu0 %v1256
    %2081 = vmatprep.subr.bf16.mxu0 0
    %2082 = vmatpush1.bf16.msra.mxu0 %v1257
    %2083 = vmatprep.subr.bf16.mxu0 0
    %2084 = vmatpush1.bf16.msra.mxu0 %v1258
    %2085 = vmatprep.subr.bf16.mxu0 0
    %2086 = vmatpush1.bf16.msra.mxu0 %v1259
    %2087 = vmatprep.subr.bf16.mxu0 0
    %2088 = vmatpush1.bf16.msra.mxu0 %v1260
    %2089 = vmatprep.subr.bf16.mxu0 0
    %2090 = vmatpush1.bf16.msra.mxu0 %v1261
    %2091 = vmatprep.subr.bf16.mxu0 0
    %2092 = vmatpush1.bf16.msra.mxu0 %v1262
    %2093 = vmatprep.subr.bf16.mxu0 0
    %2094 = vmatpush1.bf16.msra.mxu0 %v1263
    %2095 = vmatprep.subr.bf16.mxu0 0
    %2096 = vmatpush1.bf16.msra.mxu0 %v1264
    %2097 = vmatprep.subr.bf16.mxu0 0
    %2098 = vmatpush1.bf16.msra.mxu0 %v1265
    %2099 = vmatprep.mubr.bf16.mxu0 %v2021
    %2100 = vmatmul.mubr.bf16.gmra.mrb[0].mxu0 %v2020
    %v2101 = vpop.f32.mrb[0].mxu0
    %v2102 = vadd.f32 %v2061, %v2101
    %v2103 = vpop.f32.mrb[0].mxu0
    %v2104 = vpop.f32.mrb[0].mxu0
    %v2105 = vadd.f32 %v2064, %v2104
    %v2106 = vpop.f32.mrb[0].mxu0
    %2107 = vdwg.mxu0
    %2108 = vmatprep.subr.bf16.mxu0 0
    %2109 = vmatpush1.bf16.msra.mxu0 %v1266
    %2110 = vmatprep.subr.bf16.mxu0 0
    %2111 = vmatpush1.bf16.msra.mxu0 %v1267
    %2112 = vmatprep.subr.bf16.mxu0 0
    %2113 = vmatpush1.bf16.msra.mxu0 %v1268
    %2114 = vmatprep.subr.bf16.mxu0 0
    %2115 = vmatpush1.bf16.msra.mxu0 %v1269
    %2116 = vmatprep.subr.bf16.mxu0 0
    %2117 = vmatpush1.bf16.msra.mxu0 %v1270
    %2118 = vmatprep.subr.bf16.mxu0 0
    %2119 = vmatpush1.bf16.msra.mxu0 %v1271
    %2120 = vmatprep.subr.bf16.mxu0 0
    %2121 = vmatpush1.bf16.msra.mxu0 %v1272
    %2122 = vmatprep.subr.bf16.mxu0 0
    %2123 = vmatpush1.bf16.msra.mxu0 %v1273
    %2124 = vmatprep.subr.bf16.mxu0 0
    %2125 = vmatpush1.bf16.msra.mxu0 %v1274
    %2126 = vmatprep.subr.bf16.mxu0 0
    %2127 = vmatpush1.bf16.msra.mxu0 %v1275
    %2128 = vmatprep.subr.bf16.mxu0 0
    %2129 = vmatpush1.bf16.msra.mxu0 %v1276
    %2130 = vmatprep.subr.bf16.mxu0 0
    %2131 = vmatpush1.bf16.msra.mxu0 %v1277
    %2132 = vmatprep.subr.bf16.mxu0 0
    %2133 = vmatpush1.bf16.msra.mxu0 %v1278
    %2134 = vmatprep.subr.bf16.mxu0 0
    %2135 = vmatpush1.bf16.msra.mxu0 %v1279
    %2136 = vmatprep.subr.bf16.mxu0 0
    %2137 = vmatpush1.bf16.msra.mxu0 %v1280
    %2138 = vmatprep.subr.bf16.mxu0 0
    %2139 = vmatpush1.bf16.msra.mxu0 %v1281
    %2140 = vmatprep.mubr.bf16.mxu0 %v2023
    %2141 = vmatmul.mubr.bf16.gmra.mrb[0].mxu0 %v2022
    %v2142 = vpop.f32.mrb[0].mxu0
    %v2143 = vadd.f32 %v2102, %v2142
    %v2144 = vpop.f32.mrb[0].mxu0
    %v2145 = vpop.f32.mrb[0].mxu0
    %v2146 = vadd.f32 %v2105, %v2145
    %v2147 = vpop.f32.mrb[0].mxu0
    %2148 = vdwg.mxu0
    %2149 = vmatprep.subr.bf16.mxu0 0
    %2150 = vmatpush1.bf16.msra.mxu0 %v1282
    %2151 = vmatprep.subr.bf16.mxu0 0
    %2152 = vmatpush1.bf16.msra.mxu0 %v1283
    %2153 = vmatprep.subr.bf16.mxu0 0
    %2154 = vmatpush1.bf16.msra.mxu0 %v1284
    %2155 = vmatprep.subr.bf16.mxu0 0
    %2156 = vmatpush1.bf16.msra.mxu0 %v1285
    %2157 = vmatprep.subr.bf16.mxu0 0
    %2158 = vmatpush1.bf16.msra.mxu0 %v1286
    %2159 = vmatprep.subr.bf16.mxu0 0
    %2160 = vmatpush1.bf16.msra.mxu0 %v1287
    %2161 = vmatprep.subr.bf16.mxu0 0
    %2162 = vmatpush1.bf16.msra.mxu0 %v1288
    %2163 = vmatprep.subr.bf16.mxu0 0
    %2164 = vmatpush1.bf16.msra.mxu0 %v1289
    %2165 = vmatprep.subr.bf16.mxu0 0
    %2166 = vmatpush1.bf16.msra.mxu0 %v1290
    %2167 = vmatprep.subr.bf16.mxu0 0
    %2168 = vmatpush1.bf16.msra.mxu0 %v1291
    %2169 = vmatprep.subr.bf16.mxu0 0
    %2170 = vmatpush1.bf16.msra.mxu0 %v1292
    %2171 = vmatprep.subr.bf16.mxu0 0
    %2172 = vmatpush1.bf16.msra.mxu0 %v1293
    %2173 = vmatprep.subr.bf16.mxu0 0
    %2174 = vmatpush1.bf16.msra.mxu0 %v1294
    %2175 = vmatprep.subr.bf16.mxu0 0
    %2176 = vmatpush1.bf16.msra.mxu0 %v1295
    %2177 = vmatprep.subr.bf16.mxu0 0
    %2178 = vmatpush1.bf16.msra.mxu0 %v1296
    %2179 = vmatprep.subr.bf16.mxu0 0
    %2180 = vmatpush1.bf16.msra.mxu0 %v1297
    %2181 = vmatprep.mubr.bf16.mxu0 %v2025
    %2182 = vmatmul.mubr.bf16.gmra.mrb[0].mxu0 %v2024
    %v2183 = vpop.f32.mrb[0].mxu0
    %v2184 = vadd.f32 %v2143, %v2183
    %v2185 = vpop.f32.mrb[0].mxu0
    %v2186 = vpop.f32.mrb[0].mxu0
    %v2187 = vadd.f32 %v2146, %v2186
    %v2188 = vpop.f32.mrb[0].mxu0
    %2189 = vdwg.mxu0
    %v2190 = vpack.c.bf16 %v2187, %v2184
    %2191 = vmatprep.subr.bf16.mxu0 0
    %2192 = vmatpush1.bf16.msra.mxu0 %v2190
    %2193 = vmatprep.subr.bf16.mxu0 0
    %2194 = vmatpush1.bf16.msra.mxu0 0
    %2195 = vmatprep.subr.bf16.mxu0 0
    %2196 = vmatpush1.bf16.msra.mxu0 0
    %2197 = vmatprep.subr.bf16.mxu0 0
    %2198 = vmatpush1.bf16.msra.mxu0 0
    %2199 = vmatprep.subr.bf16.mxu0 0
    %2200 = vmatpush1.bf16.msra.mxu0 0
    %2201 = vmatprep.subr.bf16.mxu0 0
    %2202 = vmatpush1.bf16.msra.mxu0 0
    %2203 = vmatprep.subr.bf16.mxu0 0
    %2204 = vmatpush1.bf16.msra.mxu0 0
    %2205 = vmatprep.subr.bf16.mxu0 0
    %2206 = vmatpush1.bf16.msra.mxu0 0
    %2207 = vmatprep.subr.bf16.mxu0 0
    %2208 = vmatpush1.bf16.msra.mxu0 0
    %2209 = vmatprep.subr.bf16.mxu0 0
    %2210 = vmatpush1.bf16.msra.mxu0 0
    %2211 = vmatprep.subr.bf16.mxu0 0
    %2212 = vmatpush1.bf16.msra.mxu0 0
    %2213 = vmatprep.subr.bf16.mxu0 0
    %2214 = vmatpush1.bf16.msra.mxu0 0
    %2215 = vmatprep.subr.bf16.mxu0 0
    %2216 = vmatpush1.bf16.msra.mxu0 0
    %2217 = vmatprep.subr.bf16.mxu0 0
    %2218 = vmatpush1.bf16.msra.mxu0 0
    %2219 = vmatprep.subr.bf16.mxu0 0
    %2220 = vmatpush1.bf16.msra.mxu0 0
    %2221 = vmatprep.subr.bf16.mxu0 0
    %2222 = vmatpush1.bf16.msra.mxu0 0
    %2223 = vmatprep.mubr.bf16.mxu0 0
    %2224 = vmatmul.mubr.bf16.gmra.mrb[0].mxu0 %v1540
    %v2225 = vpop.f32.mrb[0].mxu0
    %v2226 = vadd.f32 %v1532, %v2225
    %v2227 = vpop.f32.mrb[0].mxu0
    %v2228 = vpop.f32.mrb[0].mxu0
    %v2229 = vadd.f32 %v1532, %v2228
    %v2230 = vpop.f32.mrb[0].mxu0
    %2231 = vdwg.mxu0
    %v2232 = vmax.f32 %v2226, 0.0
    %v2233 = vmax.f32 %v2229, 0.0
    %v2234 = vpack.c.bf16 %v2233, %v2232
    %v2236 = vsel %vm259, %v2234, 0
    %2238 = vmatprep.subr.bf16.mxu0 0
    %2239 = vmatpush1.bf16.msra.mxu0 %v1605
    %2240 = vmatprep.subr.bf16.mxu0 0
    %2241 = vmatpush1.bf16.msra.mxu0 %v1606
    %2242 = vmatprep.subr.bf16.mxu0 0
    %2243 = vmatpush1.bf16.msra.mxu0 0
    %2244 = vmatprep.subr.bf16.mxu0 0
    %2245 = vmatpush1.bf16.msra.mxu0 0
    %2246 = vmatprep.subr.bf16.mxu0 0
    %2247 = vmatpush1.bf16.msra.mxu0 0
    %2248 = vmatprep.subr.bf16.mxu0 0
    %2249 = vmatpush1.bf16.msra.mxu0 0
    %2250 = vmatprep.subr.bf16.mxu0 0
    %2251 = vmatpush1.bf16.msra.mxu0 0
    %2252 = vmatprep.subr.bf16.mxu0 0
    %2253 = vmatpush1.bf16.msra.mxu0 0
    %2254 = vmatprep.subr.bf16.mxu0 0
    %2255 = vmatpush1.bf16.msra.mxu0 0
    %2256 = vmatprep.subr.bf16.mxu0 0
    %2257 = vmatpush1.bf16.msra.mxu0 0
    %2258 = vmatprep.subr.bf16.mxu0 0
    %2259 = vmatpush1.bf16.msra.mxu0 0
    %2260 = vmatprep.subr.bf16.mxu0 0
    %2261 = vmatpush1.bf16.msra.mxu0 0
    %2262 = vmatprep.subr.bf16.mxu0 0
    %2263 = vmatpush1.bf16.msra.mxu0 0
    %2264 = vmatprep.subr.bf16.mxu0 0
    %2265 = vmatpush1.bf16.msra.mxu0 0
    %2266 = vmatprep.subr.bf16.mxu0 0
    %2267 = vmatpush1.bf16.msra.mxu0 0
    %2268 = vmatprep.subr.bf16.mxu0 0
    %2269 = vmatpush1.bf16.msra.mxu0 0
    %2270 = vmatprep.mubr.bf16.mxu0 0
    %2271 = vmatmul.mubr.bf16.gmra.mrb[0].mxu0 %v2236
    %v2272 = vpop.f32.mrb[0].mxu0
    %v2273 = vadd.f32 %v1595, %v2272
    %v2274 = vpop.f32.mrb[0].mxu0
    %v2275 = vpop.f32.mrb[0].mxu0
    %v2276 = vadd.f32 %v1595, %v2275
    %v2277 = vpop.f32.mrb[0].mxu0
    %2278 = vdwg.mxu0
    %v2280 = vsel %vm259, %v1783, 0
    %2282 = vmatprep.subr.bf16.mxu0 0
    %2283 = vmatpush1.bf16.msra.mxu0 %v1672
    %2284 = vmatprep.subr.bf16.mxu0 0
    %2285 = vmatpush1.bf16.msra.mxu0 %v1673
    %2286 = vmatprep.subr.bf16.mxu0 0
    %2287 = vmatpush1.bf16.msra.mxu0 0
    %2288 = vmatprep.subr.bf16.mxu0 0
    %2289 = vmatpush1.bf16.msra.mxu0 0
    %2290 = vmatprep.subr.bf16.mxu0 0
    %2291 = vmatpush1.bf16.msra.mxu0 0
    %2292 = vmatprep.subr.bf16.mxu0 0
    %2293 = vmatpush1.bf16.msra.mxu0 0
    %2294 = vmatprep.subr.bf16.mxu0 0
    %2295 = vmatpush1.bf16.msra.mxu0 0
    %2296 = vmatprep.subr.bf16.mxu0 0
    %2297 = vmatpush1.bf16.msra.mxu0 0
    %2298 = vmatprep.subr.bf16.mxu0 0
    %2299 = vmatpush1.bf16.msra.mxu0 0
    %2300 = vmatprep.subr.bf16.mxu0 0
    %2301 = vmatpush1.bf16.msra.mxu0 0
    %2302 = vmatprep.subr.bf16.mxu0 0
    %2303 = vmatpush1.bf16.msra.mxu0 0
    %2304 = vmatprep.subr.bf16.mxu0 0
    %2305 = vmatpush1.bf16.msra.mxu0 0
    %2306 = vmatprep.subr.bf16.mxu0 0
    %2307 = vmatpush1.bf16.msra.mxu0 0
    %2308 = vmatprep.subr.bf16.mxu0 0
    %2309 = vmatpush1.bf16.msra.mxu0 0
    %2310 = vmatprep.subr.bf16.mxu0 0
    %2311 = vmatpush1.bf16.msra.mxu0 0
    %2312 = vmatprep.subr.bf16.mxu0 0
    %2313 = vmatpush1.bf16.msra.mxu0 0
    %2314 = vmatprep.mubr.bf16.mxu0 0
    %2315 = vmatmul.mubr.bf16.gmra.mrb[0].mxu0 %v2280
    %v2316 = vpop.f32.mrb[0].mxu0
    %v2317 = vadd.f32 %v1662, %v2316
    %v2318 = vpop.f32.mrb[0].mxu0
    %v2319 = vpop.f32.mrb[0].mxu0
    %v2320 = vadd.f32 %v1662, %v2319
    %v2321 = vpop.f32.mrb[0].mxu0
    %2322 = vdwg.mxu0
    %v2323 = vadd.f32 %v2273, %v2317
    %v2324 = vadd.f32 %v2276, %v2320
    %v2325 = vxor.u32 %v2323, 2147483648
    %v2326 = vxor.u32 %v2324, 2147483648
    %v2327 = vmul.f32 %v2325, 1.442695
    %v2328 = vpow.pop %v2327
    %v2329 = vmul.f32 %v2326, 1.442695
    %v2330 = vpow.pop %v2329
    %v2331 = vadd.f32 %v2328, 1.0
    %v2332 = vadd.f32 %v2330, 1.0
    %v2333 = vrcp.pop %v2331
    %v2334 = vmul.f32 1.0, %v2333
    %v2335 = vrcp.pop %v2332
    %v2336 = vmul.f32 1.0, %v2335
    %2339 = vrot.lane.b32.xlu0 %v2317, 64
    %v2340 = vpop.permute.xlu0 %2339
    %2341 = vrot.lane.b32.xlu0 %v2320, 64
    %v2342 = vpop.permute.xlu0 %2341
    %v2345 = vmul.f32 %v2334, %v2340
    %v2346 = vmul.f32 %v2336, %v2342
    %2349 = vrot.lane.b32.xlu0 %v2345, 64
    %v2350 = vpop.permute.xlu0 %2349
    %2351 = vrot.lane.b32.xlu0 %v2346, 64
    %v2352 = vpop.permute.xlu0 %2351
    %v2355 = vadd.f32 %v2273, %v2350
    %v2356 = vadd.f32 %v2276, %v2352
    %v2357 = vtanh.pop %v2355
    %v2358 = vtanh.pop %v2356
    %v2359 = vsub.f32 1.0, %v2334
    %v2360 = vsub.f32 1.0, %v2336
    %2363 = vrot.lane.b32.xlu0 %v2357, 96
    %v2364 = vpop.permute.xlu0 %2363
    %2365 = vrot.lane.b32.xlu0 %v2358, 96
    %v2366 = vpop.permute.xlu0 %2365
    %v2369 = vmul.f32 %v2359, %v2364
    %v2370 = vmul.f32 %v2360, %v2366
    %v2371 = vmul.f32 %v2334, %v1778
    %v2372 = vmul.f32 %v2336, %v1779
    %v2373 = vadd.f32 %v2369, %v2371
    %v2374 = vadd.f32 %v2370, %v2372
    %2377 = vrot.lane.b32.xlu0 %v2373, 96
    %v2378 = vpop.permute.xlu0 %2377
    %2379 = vrot.lane.b32.xlu0 %v2374, 96
    %v2380 = vpop.permute.xlu0 %2379
    %2383 = vst.msk [vmem:[#allocation2] sm:$0xff] %vm259, %v2378
    %2384 = vst.msk [vmem:[#allocation2 + $0x8] sm:$0xff] %vm259, %v2380
    // Predicated region
    $region70: #{tpu_custom_call.1} parent=1 // pred_check
      _
    $region71: #{tpu_custom_call.1} parent=1 // pred_check_branch
      %2386 = sbr.rel (0) target = $region73
    $region72: #{tpu_custom_call.1} parent=1 // pred_region
      %s2388 = ssub.s32 256, 256
      %2389 = vsyncadd [#allocation3], %s2388
      %s2390 = sshll.u32 [#allocation2], 4
      %s2391 = int_to_ptr.vmem [resolvable:$true] %s2390
      %2396 = dma.vmem_to_hbm [thread:$0]  %s2391, 256, %s17, [#allocation3], 128, 128, 8
    $region73: #{tpu_custom_call.1} parent=1 // pred_fallthru
      _
    // Predicated region
    $region74: #{tpu_custom_call.1} parent=1 // pred_check
      _
    $region75: #{tpu_custom_call.1} parent=1 // pred_check_branch
      %2398 = sbr.rel (0) target = $region77
    $region76: #{tpu_custom_call.1} parent=1 // pred_region
      %2399 = dma.done [#allocation3], 256
    $region77: #{tpu_custom_call.1} parent=1 // pred_fallthru
      _
    %2400 = vsyncpa [#allocation3], 1

</llo_original>
